<compile_context>
chip_gen: v5e
topology: v5e:2x2
jax: 0.10.0
libtpu: 0.0.40
codegen_flags: <defaults>
</compile_context>

<pallas_src>
import functools

import numpy as np
import jax
import jax.numpy as jnp
from jax.experimental import pallas as pl
from jax.experimental.pallas import tpu as pltpu

LEAK = 0.2          # LeakyReLU negative slope
EPS = 1e-8          # PixelNormalizationLayer epsilon
DOT_DTYPE = jnp.bfloat16   # MXU operand dtype (f32 accumulation); set jnp.float32 for exact f32


def _lrelu(x):
    return jnp.where(x >= 0, x, LEAK * x)


# ---------------------------------------------------------------------------
# Single fused kernel.
#   z_ref:     (rb, Z)        latent rows
#   wlin_ref:  (Z, 16C)       latent weight, columns pre-permuted to NHWC-flat order
#   blin_ref:  (1, 16C)
#   wconv_ref: (16C, 16C)     3x3/pad=1 conv folded to a dense matrix (NHWC-flat space)
#   bconv_ref: (1, 16C)       conv bias tiled over the 16 spatial positions
#   mnorm_ref: (16C, 16C)     block-diagonal (1/C) matrix -> per-position channel mean
#   wrgb_ref:  (16C, 128)     toRGB 1x1 conv folded to NCHW-flat output, zero-padded lanes
#   brgb_ref:  (1, 128)
#   o_ref:     (rb, 128)      tanh(RGB) in NCHW-flat order (cols 0..3*16-1), rest zeros
# ---------------------------------------------------------------------------
def progen_kernel(z_ref, wlin_ref, blin_ref, wconv_ref, bconv_ref,
                  mnorm_ref, wrgb_ref, brgb_ref, o_ref):
    # PixelNorm over the latent dim
    z = z_ref[...].astype(jnp.float32)
    zn = z * jax.lax.rsqrt(jnp.mean(z * z, axis=-1, keepdims=True) + EPS)

    # EqualizedLinear + LeakyReLU (output already in NHWC-flat order)
    y = jnp.dot(zn.astype(DOT_DTYPE), wlin_ref[...],
                preferred_element_type=jnp.float32) + blin_ref[...]
    y = _lrelu(y)

    # 3x3 conv as one dense matmul (K = 16C), + bias, LeakyReLU
    h = jnp.dot(y.astype(DOT_DTYPE), wconv_ref[...],
                preferred_element_type=jnp.float32) + bconv_ref[...]
    h = _lrelu(h)

    # Per-position channel PixelNorm via block-diagonal mean matrix (kept f32)
    ms = jnp.dot(h * h, mnorm_ref[...], preferred_element_type=jnp.float32)
    h = h * jax.lax.rsqrt(ms + EPS)

    # toRGB (1x1 conv folded to NCHW-flat, lane-padded to 128) + tanh
    rgb = jnp.dot(h.astype(DOT_DTYPE), wrgb_ref[...],
                  preferred_element_type=jnp.float32) + brgb_ref[...]
    o_ref[...] = jnp.tanh(rgb)


# ---------------------------------------------------------------------------
# Raw (torch-layout) parameter init. Equalized-lr scale sqrt(2/fan_in) is folded into
# the stored weights; init_bias=True -> zero biases. If real PyTorch weights are loaded,
# use these same layouts: w_lin (16C, Z), w_conv (Cout, Cin, 3, 3), w_rgb (3, C).
# ---------------------------------------------------------------------------
def init_params(key, z_dim, channel_depth, out_channels=3):
    k1, k2, k3 = jax.random.split(key, 3)
    c = channel_depth
    w_lin = jax.random.normal(k1, (16 * c, z_dim), jnp.float32) * np.sqrt(2.0 / z_dim)
    b_lin = jnp.zeros((16 * c,), jnp.float32)
    w_conv = jax.random.normal(k2, (c, c, 3, 3), jnp.float32) * np.sqrt(2.0 / (9 * c))
    b_conv = jnp.zeros((c,), jnp.float32)
    w_rgb = jax.random.normal(k3, (out_channels, c), jnp.float32) * np.sqrt(2.0 / c)
    b_rgb = jnp.zeros((out_channels,), jnp.float32)
    return dict(w_lin=w_lin, b_lin=b_lin, w_conv=w_conv, b_conv=b_conv,
                w_rgb=w_rgb, b_rgb=b_rgb)


# ---------------------------------------------------------------------------
# One-time preparation: permutation, conv-matrix folding, lane padding, dtype casts.
# ---------------------------------------------------------------------------
def prepare_params(raw, dot_dtype=DOT_DTYPE):
    C = raw["b_conv"].shape[0]
    R = raw["w_rgb"].shape[0]
    P = 16                              # 4x4 spatial positions
    F = P * C
    out_pad = max(128, ((R * P + 127) // 128) * 128)

    # Latent weight: permute columns NCHW-flat (c*16+p) -> NHWC-flat (p*C+c)
    j = np.arange(F)
    src = (j % C) * P + (j // C)
    w_lin_p = raw["w_lin"].T[:, src]                       # (Z, F)
    b_lin_p = raw["b_lin"][src][None, :]                   # (1, F)

    # 3x3 / pad=1 cross-correlation on the 4x4 grid folded to a dense (F, F) matrix
    S = np.zeros((P, 3, 3, P), np.float32)                 # (pos_in, ky, kx, pos_out)
    for ho in range(4):
        for wo in range(4):
            for ky in range(3):
                for kx in range(3):
                    hi, wi = ho + ky - 1, wo + kx - 1
                    if 0 <= hi < 4 and 0 <= wi < 4:
                        S[hi * 4 + wi, ky, kx, ho * 4 + wo] = 1.0
    w_conv_big = jnp.einsum("pklq,oikl->piqo", jnp.asarray(S),
                            raw["w_conv"]).reshape(F, F)   # row pi*C+ci, col po*C+co
    b_conv_big = jnp.tile(raw["b_conv"], P)[None, :]       # (1, F)

    # Block-diagonal per-position channel-mean matrix (exact, kept f32)
    pos = np.arange(F) // C
    m_norm = jnp.asarray((pos[:, None] == pos[None, :]).astype(np.float32) / C)

    # toRGB folded to NCHW-flat output columns (r*16 + pos), zero-padded to out_pad lanes
    eye = jnp.eye(P, dtype=jnp.float32)
    w_rgb_flat = jnp.einsum("pq,ri->pirq", eye, raw["w_rgb"]).reshape(F, R * P)
    w_rgb_big = jnp.zeros((F, out_pad), jnp.float32).at[:, :R * P].set(w_rgb_flat)
    b_rgb_big = jnp.zeros((out_pad,), jnp.float32).at[:R * P].set(
        jnp.repeat(raw["b_rgb"], P))[None, :]

    return dict(
        w_lin=w_lin_p.astype(dot_dtype), b_lin=b_lin_p.astype(jnp.float32),
        w_conv=w_conv_big.astype(dot_dtype), b_conv=b_conv_big.astype(jnp.float32),
        m_norm=m_norm,
        w_rgb=w_rgb_big.astype(dot_dtype), b_rgb=b_rgb_big.astype(jnp.float32),
    )


def _row_block(batch):
    # >=512-row tiles reach ~85% of HBM roofline; per-grid-step overhead ~0.35us.
    for cand in (512, 256, 128, 64, 32, 16, 8):
        if batch >= cand and batch % cand == 0:
            return cand
    return batch  # tiny batch: single block covering the full array


# ---------------------------------------------------------------------------
# Forward wrapper: one pallas_call + a static slice/reshape to NCHW (B, 3, 4, 4).
# ---------------------------------------------------------------------------
@functools.partial(jax.jit, static_argnames=("out_channels",))
def pro_generator_forward(z, kp, *, out_channels=3):
    B = z.shape[0]
    z2d = z.reshape(B, -1)                                 # x.view(-1, features)
    Z = z2d.shape[1]
    F = kp["w_lin"].shape[1]
    out_pad = kp["w_rgb"].shape[1]

    rb = _row_block(B)
    grid = (B // rb,)
    resident = lambda i: (0, 0)                            # weights stay in VMEM every step

    out = pl.pallas_call(
        progen_kernel,
        out_shape=jax.ShapeDtypeStruct((B, out_pad), jnp.float32),
        grid_spec=pltpu.PrefetchScalarGridSpec(
            num_scalar_prefetch=0,
            grid=grid,
            in_specs=[
                pl.BlockSpec((rb, Z), lambda i: (i, 0)),
                pl.BlockSpec((Z, F), resident),
                pl.BlockSpec((1, F), resident),
                pl.BlockSpec((F, F), resident),
                pl.BlockSpec((1, F), resident),
                pl.BlockSpec((F, F), resident),
                pl.BlockSpec((F, out_pad), resident),
                pl.BlockSpec((1, out_pad), resident),
            ],
            out_specs=pl.BlockSpec((rb, out_pad), lambda i: (i, 0)),
        ),
        compiler_params=pltpu.CompilerParams(
            dimension_semantics=("parallel",)),            # lets v7x use both TCs
    )(z2d, kp["w_lin"], kp["b_lin"], kp["w_conv"], kp["b_conv"],
      kp["m_norm"], kp["w_rgb"], kp["b_rgb"])

    # Columns are already NCHW-flat (r*16 + h*4 + w); static slice drops the lane padding.
    return out[:, :out_channels * 16].reshape(B, out_channels, 4, 4)

    # TODO(synk): ScaleBlocks / toRGB[-2] alpha-blending path (only active after
    # incrementdepth + set_alpha) is not exercised at the module's initial state.


# ---------------------------------------------------------------------------
# Pure-JAX/XLA reference (f32 everywhere) for a structural-correctness check.
# ---------------------------------------------------------------------------
def reference_forward(z, raw):
    B = z.shape[0]
    x = z.reshape(B, -1)
    x = x * jax.lax.rsqrt(jnp.mean(x * x, axis=1, keepdims=True) + EPS)
    y = x @ raw["w_lin"].T + raw["b_lin"]
    y = jnp.where(y >= 0, y, LEAK * y)
    C = raw["b_conv"].shape[0]
    x = y.reshape(B, C, 4, 4)
    x = jax.lax.conv_general_dilated(
        x, raw["w_conv"], window_strides=(1, 1), padding=((1, 1), (1, 1)),
        dimension_numbers=("NCHW", "OIHW", "NCHW"))
    x = x + raw["b_conv"][None, :, None, None]
    x = jnp.where(x >= 0, x, LEAK * x)
    x = x * jax.lax.rsqrt(jnp.mean(x * x, axis=1, keepdims=True) + EPS)
    rgb = jnp.einsum("bchw,rc->brhw", x, raw["w_rgb"]) + raw["b_rgb"][None, :, None, None]
    return jnp.tanh(rgb)


if __name__ == "__main__":
    # Small shapes consistent with the module: batch=2, z_dim=64, channel_depth=32, RGB out.
    B, Z_DIM, CH, OUT_CH = 2, 64, 32, 3

    key = jax.random.PRNGKey(0)
    k_param, k_z = jax.random.split(key)
    raw = init_params(k_param, Z_DIM, CH, OUT_CH)
    kparams = prepare_params(raw)
    z = jax.random.normal(k_z, (B, Z_DIM), jnp.float32)

    out = pro_generator_forward(z, kparams, out_channels=OUT_CH)
    out = jax.block_until_ready(out)
    assert out.shape == (B, OUT_CH, 4, 4), out.shape
    assert bool(jnp.all(jnp.isfinite(out)))

    # Structural check vs. f32 XLA reference (tolerance covers bf16 MXU operands).
    ref = reference_forward(z, raw)
    max_err = float(jnp.max(jnp.abs(out - ref)))
    assert max_err < 0.1, f"mismatch vs reference: max abs err {max_err}"

    print("KERNEL_OK")
</pallas_src>

<mosaic_0001>
module attributes {stable_mosaic.version = 11 : i64} {
  func.func @progen_kernel(%arg0: i32, %arg1: memref<2x64xf32, #tpu.memory_space<vmem>>, %arg2: memref<64x512xbf16, #tpu.memory_space<vmem>>, %arg3: memref<1x512xf32, #tpu.memory_space<vmem>>, %arg4: memref<512x512xbf16, #tpu.memory_space<vmem>>, %arg5: memref<1x512xf32, #tpu.memory_space<vmem>>, %arg6: memref<512x512xf32, #tpu.memory_space<vmem>>, %arg7: memref<512x128xbf16, #tpu.memory_space<vmem>>, %arg8: memref<1x128xf32, #tpu.memory_space<vmem>>, %arg9: memref<2x128xf32, #tpu.memory_space<vmem>>) attributes {dimension_semantics = [#tpu.dimension_semantics<parallel>], iteration_bounds = array<i64: 1>, scalar_prefetch = 0 : i64, scratch_operands = 0 : i64, tpu.core_type = #tpu.core_type<tc>, window_params = [{transform_indices = @transform_0, window_bounds = array<i64: 2, 64>}, {pipeline_mode = #tpu.pipeline_mode<synchronous>, transform_indices = @transform_1, window_bounds = array<i64: 64, 512>}, {pipeline_mode = #tpu.pipeline_mode<synchronous>, transform_indices = @transform_2, window_bounds = array<i64: 1, 512>}, {pipeline_mode = #tpu.pipeline_mode<synchronous>, transform_indices = @transform_3, window_bounds = array<i64: 512, 512>}, {pipeline_mode = #tpu.pipeline_mode<synchronous>, transform_indices = @transform_4, window_bounds = array<i64: 1, 512>}, {pipeline_mode = #tpu.pipeline_mode<synchronous>, transform_indices = @transform_5, window_bounds = array<i64: 512, 512>}, {pipeline_mode = #tpu.pipeline_mode<synchronous>, transform_indices = @transform_6, window_bounds = array<i64: 512, 128>}, {pipeline_mode = #tpu.pipeline_mode<synchronous>, transform_indices = @transform_7, window_bounds = array<i64: 1, 128>}, {transform_indices = @transform_8, window_bounds = array<i64: 2, 128>}]} {
    %c0 = arith.constant 0 : index
    %c0_0 = arith.constant 0 : index
    %0 = vector.load %arg1[%c0, %c0_0] : memref<2x64xf32, #tpu.memory_space<vmem>>, vector<2x64xf32>
    %1 = arith.mulf %0, %0 : vector<2x64xf32>
    %cst = arith.constant dense<0.000000e+00> : vector<2xf32>
    %2 = vector.multi_reduction <add>, %1, %cst [1] : vector<2x64xf32> to vector<2xf32>
    %3 = vector.shape_cast %2 : vector<2xf32> to vector<2x1xf32>
    %cst_1 = arith.constant 6.400000e+01 : f32
    %4 = vector.broadcast %cst_1 : f32 to vector<2x1xf32>
    %5 = arith.divf %3, %4 : vector<2x1xf32>
    %cst_2 = arith.constant 9.99999993E-9 : f32
    %6 = vector.broadcast %cst_2 : f32 to vector<2x1xf32>
    %7 = arith.addf %5, %6 : vector<2x1xf32>
    %8 = math.rsqrt %7 : vector<2x1xf32>
    %9 = vector.broadcast %8 : vector<2x1xf32> to vector<2x64xf32>
    %10 = arith.mulf %0, %9 : vector<2x64xf32>
    %11 = arith.truncf %10 : vector<2x64xf32> to vector<2x64xbf16>
    %c0_3 = arith.constant 0 : index
    %c0_4 = arith.constant 0 : index
    %12 = vector.load %arg2[%c0_3, %c0_4] : memref<64x512xbf16, #tpu.memory_space<vmem>>, vector<64x512xbf16>
    %cst_5 = arith.constant dense<0.000000e+00> : vector<2x512xf32>
    %13 = tpu.matmul %11, %12, %cst_5 {dimension_numbers = #tpu.dot_dimension_numbers<[1], [0], [0], [1], [0, 0, 1, 1], [], []>} : vector<2x64xbf16>, vector<64x512xbf16>, vector<2x512xf32> -> vector<2x512xf32>
    %c0_6 = arith.constant 0 : index
    %c0_7 = arith.constant 0 : index
    %14 = vector.load %arg3[%c0_6, %c0_7] : memref<1x512xf32, #tpu.memory_space<vmem>>, vector<1x512xf32>
    %15 = vector.broadcast %14 : vector<1x512xf32> to vector<2x512xf32>
    %16 = arith.addf %13, %15 : vector<2x512xf32>
    %cst_8 = arith.constant 0.000000e+00 : f32
    %17 = vector.broadcast %cst_8 : f32 to vector<2x512xf32>
    %18 = arith.cmpf oge, %16, %17 : vector<2x512xf32>
    %cst_9 = arith.constant 2.000000e-01 : f32
    %19 = vector.broadcast %cst_9 : f32 to vector<2x512xf32>
    %20 = arith.mulf %19, %16 : vector<2x512xf32>
    %21 = arith.select %18, %16, %20 : vector<2x512xi1>, vector<2x512xf32>
    %22 = arith.truncf %21 : vector<2x512xf32> to vector<2x512xbf16>
    %c0_10 = arith.constant 0 : index
    %c0_11 = arith.constant 0 : index
    %23 = vector.load %arg4[%c0_10, %c0_11] : memref<512x512xbf16, #tpu.memory_space<vmem>>, vector<512x512xbf16>
    %cst_12 = arith.constant dense<0.000000e+00> : vector<2x512xf32>
    %24 = tpu.matmul %22, %23, %cst_12 {dimension_numbers = #tpu.dot_dimension_numbers<[1], [0], [0], [1], [0, 0, 1, 1], [], []>} : vector<2x512xbf16>, vector<512x512xbf16>, vector<2x512xf32> -> vector<2x512xf32>
    %c0_13 = arith.constant 0 : index
    %c0_14 = arith.constant 0 : index
    %25 = vector.load %arg5[%c0_13, %c0_14] : memref<1x512xf32, #tpu.memory_space<vmem>>, vector<1x512xf32>
    %26 = vector.broadcast %25 : vector<1x512xf32> to vector<2x512xf32>
    %27 = arith.addf %24, %26 : vector<2x512xf32>
    %cst_15 = arith.constant 0.000000e+00 : f32
    %28 = vector.broadcast %cst_15 : f32 to vector<2x512xf32>
    %29 = arith.cmpf oge, %27, %28 : vector<2x512xf32>
    %cst_16 = arith.constant 2.000000e-01 : f32
    %30 = vector.broadcast %cst_16 : f32 to vector<2x512xf32>
    %31 = arith.mulf %30, %27 : vector<2x512xf32>
    %32 = arith.select %29, %27, %31 : vector<2x512xi1>, vector<2x512xf32>
    %33 = arith.mulf %32, %32 : vector<2x512xf32>
    %c0_17 = arith.constant 0 : index
    %c0_18 = arith.constant 0 : index
    %34 = vector.load %arg6[%c0_17, %c0_18] : memref<512x512xf32, #tpu.memory_space<vmem>>, vector<512x512xf32>
    %cst_19 = arith.constant dense<0.000000e+00> : vector<2x512xf32>
    %35 = tpu.matmul %33, %34, %cst_19 {dimension_numbers = #tpu.dot_dimension_numbers<[1], [0], [0], [1], [0, 0, 1, 1], [], []>} : vector<2x512xf32>, vector<512x512xf32>, vector<2x512xf32> -> vector<2x512xf32>
    %cst_20 = arith.constant 9.99999993E-9 : f32
    %36 = vector.broadcast %cst_20 : f32 to vector<2x512xf32>
    %37 = arith.addf %35, %36 : vector<2x512xf32>
    %38 = math.rsqrt %37 : vector<2x512xf32>
    %39 = arith.mulf %32, %38 : vector<2x512xf32>
    %40 = arith.truncf %39 : vector<2x512xf32> to vector<2x512xbf16>
    %c0_21 = arith.constant 0 : index
    %c0_22 = arith.constant 0 : index
    %41 = vector.load %arg7[%c0_21, %c0_22] : memref<512x128xbf16, #tpu.memory_space<vmem>>, vector<512x128xbf16>
    %cst_23 = arith.constant dense<0.000000e+00> : vector<2x128xf32>
    %42 = tpu.matmul %40, %41, %cst_23 {dimension_numbers = #tpu.dot_dimension_numbers<[1], [0], [0], [1], [0, 0, 1, 1], [], []>} : vector<2x512xbf16>, vector<512x128xbf16>, vector<2x128xf32> -> vector<2x128xf32>
    %c0_24 = arith.constant 0 : index
    %c0_25 = arith.constant 0 : index
    %43 = vector.load %arg8[%c0_24, %c0_25] : memref<1x128xf32, #tpu.memory_space<vmem>>, vector<1x128xf32>
    %44 = vector.broadcast %43 : vector<1x128xf32> to vector<2x128xf32>
    %45 = arith.addf %42, %44 : vector<2x128xf32>
    %46 = math.tanh %45 : vector<2x128xf32>
    %c0_26 = arith.constant 0 : index
    %c0_27 = arith.constant 0 : index
    %47 = vector.load %arg9[%c0_26, %c0_27] : memref<2x128xf32, #tpu.memory_space<vmem>>, vector<2x128xf32>
    tpu.vector_store %arg9[%c0_26, %c0_27], %46 {strides = array<i32>} : memref<2x128xf32, #tpu.memory_space<vmem>>, vector<2x128xf32>,
    return
  }
  func.func @transform_0(%arg0: i32) -> (i32, i32) {
    %c0_i32 = arith.constant 0 : i32
    %c0_i32_0 = arith.constant 0 : i32
    return %arg0, %c0_i32 : i32, i32
  }
  func.func @transform_1(%arg0: i32) -> (i32, i32) {
    %c0_i32 = arith.constant 0 : i32
    %c0_i32_0 = arith.constant 0 : i32
    %c0_i32_1 = arith.constant 0 : i32
    return %c0_i32, %c0_i32_0 : i32, i32
  }
  func.func @transform_2(%arg0: i32) -> (i32, i32) {
    %c0_i32 = arith.constant 0 : i32
    %c0_i32_0 = arith.constant 0 : i32
    %c0_i32_1 = arith.constant 0 : i32
    return %c0_i32, %c0_i32_0 : i32, i32
  }
  func.func @transform_3(%arg0: i32) -> (i32, i32) {
    %c0_i32 = arith.constant 0 : i32
    %c0_i32_0 = arith.constant 0 : i32
    %c0_i32_1 = arith.constant 0 : i32
    return %c0_i32, %c0_i32_0 : i32, i32
  }
  func.func @transform_4(%arg0: i32) -> (i32, i32) {
    %c0_i32 = arith.constant 0 : i32
    %c0_i32_0 = arith.constant 0 : i32
    %c0_i32_1 = arith.constant 0 : i32
    return %c0_i32, %c0_i32_0 : i32, i32
  }
  func.func @transform_5(%arg0: i32) -> (i32, i32) {
    %c0_i32 = arith.constant 0 : i32
    %c0_i32_0 = arith.constant 0 : i32
    %c0_i32_1 = arith.constant 0 : i32
    return %c0_i32, %c0_i32_0 : i32, i32
  }
  func.func @transform_6(%arg0: i32) -> (i32, i32) {
    %c0_i32 = arith.constant 0 : i32
    %c0_i32_0 = arith.constant 0 : i32
    %c0_i32_1 = arith.constant 0 : i32
    return %c0_i32, %c0_i32_0 : i32, i32
  }
  func.func @transform_7(%arg0: i32) -> (i32, i32) {
    %c0_i32 = arith.constant 0 : i32
    %c0_i32_0 = arith.constant 0 : i32
    %c0_i32_1 = arith.constant 0 : i32
    return %c0_i32, %c0_i32_0 : i32, i32
  }
  func.func @transform_8(%arg0: i32) -> (i32, i32) {
    %c0_i32 = arith.constant 0 : i32
    %c0_i32_0 = arith.constant 0 : i32
    return %arg0, %c0_i32 : i32, i32
  }
}

</mosaic_0001>

<llo_original>
// kernel: pro_generator_forward.1
$region0: #{pro_generator_forward.1}
  #allocation0 [shape = 'u32[]', space=smem, size = 0x4, offset = 0x4, fixed_abs, tag = 'smem constant byte address 0x4 - core index']
  #allocation1 [shape = 'u32[72,128]{1,0:T(1,128)}', space=vmem, size = 0x9000, scoped, tag = 'internal scratch']
  %s0 = inlined_call_operand.hbm [shape: f32[2,64], index: 0, kind: input, shape index: {}]
  %s1 = inlined_call_operand.hbm [shape: bf16[64,512], index: 1, kind: input, shape index: {}]
  %s2 = inlined_call_operand.hbm [shape: f32[1,512], index: 2, kind: input, shape index: {}]
  %s3 = inlined_call_operand.hbm [shape: bf16[512,512], index: 3, kind: input, shape index: {}]
  %s4 = inlined_call_operand.hbm [shape: f32[1,512], index: 4, kind: input, shape index: {}]
  %s5 = inlined_call_operand.hbm [shape: f32[512,512], index: 5, kind: input, shape index: {}]
  %s6 = inlined_call_operand.hbm [shape: bf16[512,128], index: 6, kind: input, shape index: {}]
  %s7 = inlined_call_operand.vmem [shape: f32[1,128], index: 7, kind: input, shape index: {}]
  %s8 = inlined_call_operand.vmem [shape: f32[2,128], index: 8, kind: output, shape index: {}]
  %s9 = sld [smem:[#allocation0]]
  $region70: #{pro_generator_forward.1} parent=0
    _
  %s11 = ssub.s32 1, %s9
  %s12 = scalar_select 0, %s11, %s9
  $region1: #{pro_generator_forward.1} parent=0
    #allocation2 [shape = 'u8[1024]{0}', space=vmem, size = 0x400, scoped, tag = 'input window, operand 0, single buffered']
    #allocation3 [shape = 's32[1]{0}', space=sflag, size = 0x4, scoped, tag = 'scoped memory for pro_generator_forward.1']
    #allocation4 [shape = 'u8[65536]{0}', space=vmem, size = 0x10000, scoped, tag = 'input window, operand 1, single buffered']
    #allocation5 [shape = 's32[1]{0}', space=sflag, size = 0x4, scoped, tag = 'scoped memory for pro_generator_forward.1']
    #allocation6 [shape = 'u8[2048]{0}', space=vmem, size = 0x800, scoped, tag = 'input window, operand 2, single buffered']
    #allocation7 [shape = 'u8[524288]{0}', space=vmem, size = 0x80000, scoped, tag = 'input window, operand 3, single buffered']
    #allocation8 [shape = 's32[1]{0}', space=sflag, size = 0x4, scoped, tag = 'scoped memory for pro_generator_forward.1']
    #allocation9 [shape = 'u8[2048]{0}', space=vmem, size = 0x800, scoped, tag = 'input window, operand 4, single buffered']
    #allocation10 [shape = 'u8[1048576]{0}', space=vmem, size = 0x100000, scoped, tag = 'input window, operand 5, single buffered']
    #allocation11 [shape = 's32[1]{0}', space=sflag, size = 0x4, scoped, tag = 'scoped memory for pro_generator_forward.1']
    #allocation12 [shape = 'u8[131072]{0}', space=vmem, size = 0x20000, scoped, tag = 'input window, operand 6, single buffered']
    %13 = vsyncpa [#allocation3], 0
    %14 = vsyncpa [#allocation5], 0
    %15 = vsyncpa [#allocation8], 0
    %16 = vsyncpa [#allocation11], 0
    // Predicated region
    $region2: #{pro_generator_forward.1} parent=1 // pred_check
      _
    $region3: #{pro_generator_forward.1} parent=1 // pred_check_branch
      %18 = sbr.rel (0) target = $region5
    $region4: #{pro_generator_forward.1} parent=1 // pred_region
      %20 = vsyncadd [#allocation3], 0
      %s22 = sshll.u32 %s0, 4
      %s23 = int_to_ptr.hbm [resolvable:$true] %s22
      %s24 = sshll.u32 [#allocation2], 4
      %s25 = int_to_ptr.vmem [resolvable:$true] %s24
      %27 = dma.hbm_to_vmem [thread:$0]  %s23, 32, %s25, [#allocation3]
    $region5: #{pro_generator_forward.1} parent=1 // pred_fallthru
      _
    // Predicated region
    $region6: #{pro_generator_forward.1} parent=1 // pred_check
      _
    $region7: #{pro_generator_forward.1} parent=1 // pred_check_branch
      %29 = sbr.rel (0) target = $region9
    $region8: #{pro_generator_forward.1} parent=1 // pred_region
      %31 = vsyncadd [#allocation5], 0
      %s32 = sshll.u32 %s1, 4
      %s33 = int_to_ptr.hbm [resolvable:$true] %s32
      %s34 = sshll.u32 [#allocation4], 4
      %s35 = int_to_ptr.vmem [resolvable:$true] %s34
      %40 = dma.hbm_to_vmem [thread:$0]  %s33, 2048, %s35, [#allocation5], 256, 256, 16
    $region9: #{pro_generator_forward.1} parent=1 // pred_fallthru
      _
    // Predicated region
    $region10: #{pro_generator_forward.1} parent=1 // pred_check
      _
    $region11: #{pro_generator_forward.1} parent=1 // pred_check_branch
      %42 = sbr.rel (0) target = $region13
    $region12: #{pro_generator_forward.1} parent=1 // pred_region
      %44 = vsyncadd [#allocation5], 0
      %s46 = sshll.u32 %s2, 4
      %s47 = int_to_ptr.hbm [resolvable:$true] %s46
      %s48 = sshll.u32 [#allocation6], 4
      %s49 = int_to_ptr.vmem [resolvable:$true] %s48
      %51 = dma.hbm_to_vmem [thread:$0]  %s47, 64, %s49, [#allocation5]
    $region13: #{pro_generator_forward.1} parent=1 // pred_fallthru
      _
    // Predicated region
    $region14: #{pro_generator_forward.1} parent=1 // pred_check
      _
    $region15: #{pro_generator_forward.1} parent=1 // pred_check_branch
      %53 = sbr.rel (0) target = $region17
    $region16: #{pro_generator_forward.1} parent=1 // pred_region
      %55 = vsyncadd [#allocation8], 0
      %s56 = sshll.u32 %s3, 4
      %s57 = int_to_ptr.hbm [resolvable:$true] %s56
      %s58 = sshll.u32 [#allocation7], 4
      %s59 = int_to_ptr.vmem [resolvable:$true] %s58
      %64 = dma.hbm_to_vmem [thread:$0]  %s57, 16384, %s59, [#allocation8], 256, 256, 16
    $region17: #{pro_generator_forward.1} parent=1 // pred_fallthru
      _
    // Predicated region
    $region18: #{pro_generator_forward.1} parent=1 // pred_check
      _
    $region19: #{pro_generator_forward.1} parent=1 // pred_check_branch
      %66 = sbr.rel (0) target = $region21
    $region20: #{pro_generator_forward.1} parent=1 // pred_region
      %68 = vsyncadd [#allocation8], 0
      %s70 = sshll.u32 %s4, 4
      %s71 = int_to_ptr.hbm [resolvable:$true] %s70
      %s72 = sshll.u32 [#allocation9], 4
      %s73 = int_to_ptr.vmem [resolvable:$true] %s72
      %75 = dma.hbm_to_vmem [thread:$0]  %s71, 64, %s73, [#allocation8]
    $region21: #{pro_generator_forward.1} parent=1 // pred_fallthru
      _
    // Predicated region
    $region22: #{pro_generator_forward.1} parent=1 // pred_check
      _
    $region23: #{pro_generator_forward.1} parent=1 // pred_check_branch
      %77 = sbr.rel (0) target = $region25
    $region24: #{pro_generator_forward.1} parent=1 // pred_region
      %79 = vsyncadd [#allocation11], 0
      %s80 = sshll.u32 %s5, 4
      %s81 = int_to_ptr.hbm [resolvable:$true] %s80
      %s82 = sshll.u32 [#allocation10], 4
      %s83 = int_to_ptr.vmem [resolvable:$true] %s82
      %88 = dma.hbm_to_vmem [thread:$0]  %s81, 32768, %s83, [#allocation11], 512, 512, 32
    $region25: #{pro_generator_forward.1} parent=1 // pred_fallthru
      _
    // Predicated region
    $region26: #{pro_generator_forward.1} parent=1 // pred_check
      _
    $region27: #{pro_generator_forward.1} parent=1 // pred_check_branch
      %90 = sbr.rel (0) target = $region29
    $region28: #{pro_generator_forward.1} parent=1 // pred_region
      %92 = vsyncadd [#allocation11], 0
      %s93 = sshll.u32 %s6, 4
      %s94 = int_to_ptr.hbm [resolvable:$true] %s93
      %s95 = sshll.u32 [#allocation12], 4
      %s96 = int_to_ptr.vmem [resolvable:$true] %s95
      %101 = dma.hbm_to_vmem [thread:$0]  %s94, 4096, %s96, [#allocation11], 64, 64, 4
    $region29: #{pro_generator_forward.1} parent=1 // pred_fallthru
      _
    // Predicated region
    $region30: #{pro_generator_forward.1} parent=1 // pred_check
      _
    $region31: #{pro_generator_forward.1} parent=1 // pred_check_branch
      %103 = sbr.rel (0) target = $region33
    $region32: #{pro_generator_forward.1} parent=1 // pred_region
      _
    $region33: #{pro_generator_forward.1} parent=1 // pred_fallthru
      _
    // Predicated region
    $region34: #{pro_generator_forward.1} parent=1 // pred_check
      _
    $region35: #{pro_generator_forward.1} parent=1 // pred_check_branch
      %105 = sbr.rel (0) target = $region37
    $region36: #{pro_generator_forward.1} parent=1 // pred_region
      %107 = dma.done [#allocation3], 32
    $region37: #{pro_generator_forward.1} parent=1 // pred_fallthru
      _
    // Predicated region
    $region38: #{pro_generator_forward.1} parent=1 // pred_check
      _
    $region39: #{pro_generator_forward.1} parent=1 // pred_check_branch
      %109 = sbr.rel (0) target = $region41
    $region40: #{pro_generator_forward.1} parent=1 // pred_region
      %111 = dma.done [#allocation5], 2048
    $region41: #{pro_generator_forward.1} parent=1 // pred_fallthru
      _
    // Predicated region
    $region42: #{pro_generator_forward.1} parent=1 // pred_check
      _
    $region43: #{pro_generator_forward.1} parent=1 // pred_check_branch
      %113 = sbr.rel (0) target = $region45
    $region44: #{pro_generator_forward.1} parent=1 // pred_region
      %115 = dma.done [#allocation5], 64
    $region45: #{pro_generator_forward.1} parent=1 // pred_fallthru
      _
    // Predicated region
    $region46: #{pro_generator_forward.1} parent=1 // pred_check
      _
    $region47: #{pro_generator_forward.1} parent=1 // pred_check_branch
      %117 = sbr.rel (0) target = $region49
    $region48: #{pro_generator_forward.1} parent=1 // pred_region
      %119 = dma.done [#allocation8], 16384
    $region49: #{pro_generator_forward.1} parent=1 // pred_fallthru
      _
    // Predicated region
    $region50: #{pro_generator_forward.1} parent=1 // pred_check
      _
    $region51: #{pro_generator_forward.1} parent=1 // pred_check_branch
      %121 = sbr.rel (0) target = $region53
    $region52: #{pro_generator_forward.1} parent=1 // pred_region
      %123 = dma.done [#allocation8], 64
    $region53: #{pro_generator_forward.1} parent=1 // pred_fallthru
      _
    // Predicated region
    $region54: #{pro_generator_forward.1} parent=1 // pred_check
      _
    $region55: #{pro_generator_forward.1} parent=1 // pred_check_branch
      %125 = sbr.rel (0) target = $region57
    $region56: #{pro_generator_forward.1} parent=1 // pred_region
      %127 = dma.done [#allocation11], 32768
    $region57: #{pro_generator_forward.1} parent=1 // pred_fallthru
      _
    // Predicated region
    $region58: #{pro_generator_forward.1} parent=1 // pred_check
      _
    $region59: #{pro_generator_forward.1} parent=1 // pred_check_branch
      %129 = sbr.rel (0) target = $region61
    $region60: #{pro_generator_forward.1} parent=1 // pred_region
      %131 = dma.done [#allocation11], 4096
    $region61: #{pro_generator_forward.1} parent=1 // pred_fallthru
      _
    %v133 = vld [vmem:[#allocation2] sm:$0x3]
    %v134 = vmul.f32 %v133, %v133
    %vm135 = vcmask 517120
    %v136 = vsel %vm135, %v134, 0.0
    %137 = vadd.xlane.f32.xlu0 %v136
    %v138 = vpop.xlane.xlu0 %137
    %v139 = vrcp.pop 64.0
    %v140 = vmul.f32 64.0, %v139
    %v141 = vsub.f32 1.0, %v140
    %v142 = vmul.f32 %v139, %v141
    %v143 = vadd.f32 %v139, %v142
    %vm144 = vweird.f32 %v139
    %v145 = vsel %vm144, %v139, %v143
    %v146 = vmul.f32 %v138, %v145
    %v147 = vadd.f32 %v146, 1e-08
    %v148 = vrsqrt.pop %v147
    %v149 = vmul.f32 %v148, %v147
    %v150 = vmul.f32 %v149, %v148
    %v151 = vmul.f32 0.5, %v150
    %v152 = vsub.f32 1.5, %v151
    %v153 = vmul.f32 %v148, %v152
    %vm154 = vweird.f32 %v147
    %vm155 = vweird.f32 %v148
    %vm156 = vmor %vm154, %vm155
    %v157 = vsel %vm156, %v148, %v153
    %v158 = vmul.f32 %v133, %v157
    %v159 = vpack.c.bf16 %v158, %v158
    %v160 = vld [vmem:[#allocation4] sm:$0xff]
    %v161 = vld [vmem:[#allocation4 + $0x8] sm:$0xff]
    %v162 = vld [vmem:[#allocation4 + $0x10] sm:$0xff]
    %v163 = vld [vmem:[#allocation4 + $0x18] sm:$0xff]
    %v164 = vld [vmem:[#allocation4 + $0x20] sm:$0xff]
    %v165 = vld [vmem:[#allocation4 + $0x28] sm:$0xff]
    %v166 = vld [vmem:[#allocation4 + $0x30] sm:$0xff]
    %v167 = vld [vmem:[#allocation4 + $0x38] sm:$0xff]
    %v168 = vld [vmem:[#allocation4 + $0x40] sm:$0xff]
    %v169 = vld [vmem:[#allocation4 + $0x48] sm:$0xff]
    %v170 = vld [vmem:[#allocation4 + $0x50] sm:$0xff]
    %v171 = vld [vmem:[#allocation4 + $0x58] sm:$0xff]
    %v172 = vld [vmem:[#allocation4 + $0x60] sm:$0xff]
    %v173 = vld [vmem:[#allocation4 + $0x68] sm:$0xff]
    %v174 = vld [vmem:[#allocation4 + $0x70] sm:$0xff]
    %v175 = vld [vmem:[#allocation4 + $0x78] sm:$0xff]
    %v176 = vld [vmem:[#allocation6] sm:$0xf]
    %v178 = vperm.slane %v176, 0
    %v179 = vperm.slane %v176, 1
    %v180 = vperm.slane %v176, 2
    %v181 = vperm.slane %v176, 3
    %v202 = vunpack.c.l.b16 %v160
    %v203 = vunpack.c.h.b16 %v160
    %v204 = vunpack.c.l.b16 %v161
    %v205 = vunpack.c.h.b16 %v161
    %v206 = vunpack.c.l.b16 %v162
    %v207 = vunpack.c.h.b16 %v162
    %v208 = vunpack.c.l.b16 %v163
    %v209 = vunpack.c.h.b16 %v163
    %v210 = vunpack.c.l.b16 %v164
    %v211 = vunpack.c.h.b16 %v164
    %v212 = vunpack.c.l.b16 %v165
    %v213 = vunpack.c.h.b16 %v165
    %v214 = vunpack.c.l.b16 %v166
    %v215 = vunpack.c.h.b16 %v166
    %v216 = vunpack.c.l.b16 %v167
    %v217 = vunpack.c.h.b16 %v167
    %v218 = vunpack.c.l.b16 %v168
    %v219 = vunpack.c.h.b16 %v168
    %v220 = vunpack.c.l.b16 %v169
    %v221 = vunpack.c.h.b16 %v169
    %v222 = vunpack.c.l.b16 %v170
    %v223 = vunpack.c.h.b16 %v170
    %v224 = vunpack.c.l.b16 %v171
    %v225 = vunpack.c.h.b16 %v171
    %v226 = vunpack.c.l.b16 %v172
    %v227 = vunpack.c.h.b16 %v172
    %v228 = vunpack.c.l.b16 %v173
    %v229 = vunpack.c.h.b16 %v173
    %v230 = vunpack.c.l.b16 %v174
    %v231 = vunpack.c.h.b16 %v174
    %v232 = vunpack.c.l.b16 %v175
    %v233 = vunpack.c.h.b16 %v175
    %v234 = vpack.c.b16 %v206, %v202
    %v235 = vpack.c.b16 %v207, %v203
    %v236 = vpack.c.b16 %v208, %v204
    %v237 = vpack.c.b16 %v209, %v205
    %v238 = vpack.c.b16 %v214, %v210
    %v239 = vpack.c.b16 %v215, %v211
    %v240 = vpack.c.b16 %v216, %v212
    %v241 = vpack.c.b16 %v217, %v213
    %v242 = vpack.c.b16 %v222, %v218
    %v243 = vpack.c.b16 %v223, %v219
    %v244 = vpack.c.b16 %v224, %v220
    %v245 = vpack.c.b16 %v225, %v221
    %v246 = vpack.c.b16 %v230, %v226
    %v247 = vpack.c.b16 %v231, %v227
    %v248 = vpack.c.b16 %v232, %v228
    %v249 = vpack.c.b16 %v233, %v229
    %vm266 = vcmask 523264
    %v268 = vsel %vm266, %v159, 0
    %270 = vmatpush.bf16.msra.mxu0 0
    %271 = vmatpush.bf16.msra.mxu0 0
    %272 = vmatpush.bf16.msra.mxu0 0
    %273 = vmatpush.bf16.msra.mxu0 0
    %274 = vmatpush.bf16.msra.mxu0 %v246
    %275 = vmatpush.bf16.msra.mxu0 %v242
    %276 = vmatpush.bf16.msra.mxu0 %v238
    %277 = vmatpush.bf16.msra.mxu0 %v234
    %278 = vmatmul.bf16.gmra.mxu0 %v268
    %v279 = vpop.f32.mrf.mxu0
    %v280 = vadd.f32 %v178, %v279
    %v281 = vpop.f32.mrf.mxu0
    %282 = vdwg.mxu0
    %283 = vmatpush.bf16.msra.mxu0 0
    %284 = vmatpush.bf16.msra.mxu0 0
    %285 = vmatpush.bf16.msra.mxu0 0
    %286 = vmatpush.bf16.msra.mxu0 0
    %287 = vmatpush.bf16.msra.mxu0 %v247
    %288 = vmatpush.bf16.msra.mxu0 %v243
    %289 = vmatpush.bf16.msra.mxu0 %v239
    %290 = vmatpush.bf16.msra.mxu0 %v235
    %291 = vmatmul.bf16.gmra.mxu0 %v268
    %v292 = vpop.f32.mrf.mxu0
    %v293 = vadd.f32 %v179, %v292
    %v294 = vpop.f32.mrf.mxu0
    %295 = vdwg.mxu0
    %296 = vmatpush.bf16.msra.mxu0 0
    %297 = vmatpush.bf16.msra.mxu0 0
    %298 = vmatpush.bf16.msra.mxu0 0
    %299 = vmatpush.bf16.msra.mxu0 0
    %300 = vmatpush.bf16.msra.mxu0 %v248
    %301 = vmatpush.bf16.msra.mxu0 %v244
    %302 = vmatpush.bf16.msra.mxu0 %v240
    %303 = vmatpush.bf16.msra.mxu0 %v236
    %304 = vmatmul.bf16.gmra.mxu0 %v268
    %v305 = vpop.f32.mrf.mxu0
    %v306 = vadd.f32 %v180, %v305
    %v307 = vpop.f32.mrf.mxu0
    %308 = vdwg.mxu0
    %309 = vmatpush.bf16.msra.mxu0 0
    %310 = vmatpush.bf16.msra.mxu0 0
    %311 = vmatpush.bf16.msra.mxu0 0
    %312 = vmatpush.bf16.msra.mxu0 0
    %313 = vmatpush.bf16.msra.mxu0 %v249
    %314 = vmatpush.bf16.msra.mxu0 %v245
    %315 = vmatpush.bf16.msra.mxu0 %v241
    %316 = vmatpush.bf16.msra.mxu0 %v237
    %317 = vmatmul.bf16.gmra.mxu0 %v268
    %v318 = vpop.f32.mrf.mxu0
    %v319 = vadd.f32 %v181, %v318
    %v320 = vpop.f32.mrf.mxu0
    %321 = vdwg.mxu0
    %vm322 = vcmp.ge.f32.partialorder %v280, 0.0
    %vm323 = vcmp.ge.f32.partialorder %v293, 0.0
    %vm324 = vcmp.ge.f32.partialorder %v306, 0.0
    %vm325 = vcmp.ge.f32.partialorder %v319, 0.0
    %v326 = vmul.f32 %v280, 0.2
    %v327 = vmul.f32 %v293, 0.2
    %v328 = vmul.f32 %v306, 0.2
    %v329 = vmul.f32 %v319, 0.2
    %v330 = vsel %vm322, %v280, %v326
    %v331 = vsel %vm323, %v293, %v327
    %v332 = vsel %vm324, %v306, %v328
    %v333 = vsel %vm325, %v319, %v329
    %v334 = vpack.c.bf16 %v330, %v330
    %v335 = vpack.c.bf16 %v331, %v331
    %v336 = vpack.c.bf16 %v332, %v332
    %v337 = vpack.c.bf16 %v333, %v333
    %v338 = vld [vmem:[#allocation7] sm:$0xff]
    %v339 = vld [vmem:[#allocation7 + $0x8] sm:$0xff]
    %v340 = vld [vmem:[#allocation7 + $0x10] sm:$0xff]
    %v341 = vld [vmem:[#allocation7 + $0x18] sm:$0xff]
    %v342 = vld [vmem:[#allocation7 + $0x20] sm:$0xff]
    %v343 = vld [vmem:[#allocation7 + $0x28] sm:$0xff]
    %v344 = vld [vmem:[#allocation7 + $0x30] sm:$0xff]
    %v345 = vld [vmem:[#allocation7 + $0x38] sm:$0xff]
    %v346 = vld [vmem:[#allocation7 + $0x40] sm:$0xff]
    %v347 = vld [vmem:[#allocation7 + $0x48] sm:$0xff]
    %v348 = vld [vmem:[#allocation7 + $0x50] sm:$0xff]
    %v349 = vld [vmem:[#allocation7 + $0x58] sm:$0xff]
    %v350 = vld [vmem:[#allocation7 + $0x60] sm:$0xff]
    %v351 = vld [vmem:[#allocation7 + $0x68] sm:$0xff]
    %v352 = vld [vmem:[#allocation7 + $0x70] sm:$0xff]
    %v353 = vld [vmem:[#allocation7 + $0x78] sm:$0xff]
    %v354 = vld [vmem:[#allocation7 + $0x80] sm:$0xff]
    %v355 = vld [vmem:[#allocation7 + $0x88] sm:$0xff]
    %v356 = vld [vmem:[#allocation7 + $0x90] sm:$0xff]
    %v357 = vld [vmem:[#allocation7 + $0x98] sm:$0xff]
    %v358 = vld [vmem:[#allocation7 + $0xa0] sm:$0xff]
    %v359 = vld [vmem:[#allocation7 + $0xa8] sm:$0xff]
    %v360 = vld [vmem:[#allocation7 + $0xb0] sm:$0xff]
    %v361 = vld [vmem:[#allocation7 + $0xb8] sm:$0xff]
    %v362 = vld [vmem:[#allocation7 + $0xc0] sm:$0xff]
    %v363 = vld [vmem:[#allocation7 + $0xc8] sm:$0xff]
    %v364 = vld [vmem:[#allocation7 + $0xd0] sm:$0xff]
    %v365 = vld [vmem:[#allocation7 + $0xd8] sm:$0xff]
    %v366 = vld [vmem:[#allocation7 + $0xe0] sm:$0xff]
    %v367 = vld [vmem:[#allocation7 + $0xe8] sm:$0xff]
    %v368 = vld [vmem:[#allocation7 + $0xf0] sm:$0xff]
    %v369 = vld [vmem:[#allocation7 + $0xf8] sm:$0xff]
    %v370 = vld [vmem:[#allocation7 + $0x100] sm:$0xff]
    %v371 = vld [vmem:[#allocation7 + $0x108] sm:$0xff]
    %v372 = vld [vmem:[#allocation7 + $0x110] sm:$0xff]
    %v373 = vld [vmem:[#allocation7 + $0x118] sm:$0xff]
    %v374 = vld [vmem:[#allocation7 + $0x120] sm:$0xff]
    %v375 = vld [vmem:[#allocation7 + $0x128] sm:$0xff]
    %v376 = vld [vmem:[#allocation7 + $0x130] sm:$0xff]
    %v377 = vld [vmem:[#allocation7 + $0x138] sm:$0xff]
    %v378 = vld [vmem:[#allocation7 + $0x140] sm:$0xff]
    %v379 = vld [vmem:[#allocation7 + $0x148] sm:$0xff]
    %v380 = vld [vmem:[#allocation7 + $0x150] sm:$0xff]
    %v381 = vld [vmem:[#allocation7 + $0x158] sm:$0xff]
    %v382 = vld [vmem:[#allocation7 + $0x160] sm:$0xff]
    %v383 = vld [vmem:[#allocation7 + $0x168] sm:$0xff]
    %v384 = vld [vmem:[#allocation7 + $0x170] sm:$0xff]
    %v385 = vld [vmem:[#allocation7 + $0x178] sm:$0xff]
    %v386 = vld [vmem:[#allocation7 + $0x180] sm:$0xff]
    %v387 = vld [vmem:[#allocation7 + $0x188] sm:$0xff]
    %v388 = vld [vmem:[#allocation7 + $0x190] sm:$0xff]
    %v389 = vld [vmem:[#allocation7 + $0x198] sm:$0xff]
    %v390 = vld [vmem:[#allocation7 + $0x1a0] sm:$0xff]
    %v391 = vld [vmem:[#allocation7 + $0x1a8] sm:$0xff]
    %v392 = vld [vmem:[#allocation7 + $0x1b0] sm:$0xff]
    %v393 = vld [vmem:[#allocation7 + $0x1b8] sm:$0xff]
    %v394 = vld [vmem:[#allocation7 + $0x1c0] sm:$0xff]
    %v395 = vld [vmem:[#allocation7 + $0x1c8] sm:$0xff]
    %v396 = vld [vmem:[#allocation7 + $0x1d0] sm:$0xff]
    %v397 = vld [vmem:[#allocation7 + $0x1d8] sm:$0xff]
    %v398 = vld [vmem:[#allocation7 + $0x1e0] sm:$0xff]
    %v399 = vld [vmem:[#allocation7 + $0x1e8] sm:$0xff]
    %v400 = vld [vmem:[#allocation7 + $0x1f0] sm:$0xff]
    %v401 = vld [vmem:[#allocation7 + $0x1f8] sm:$0xff]
    %v402 = vld [vmem:[#allocation7 + $0x200] sm:$0xff]
    %v403 = vld [vmem:[#allocation7 + $0x208] sm:$0xff]
    %v404 = vld [vmem:[#allocation7 + $0x210] sm:$0xff]
    %v405 = vld [vmem:[#allocation7 + $0x218] sm:$0xff]
    %v406 = vld [vmem:[#allocation7 + $0x220] sm:$0xff]
    %v407 = vld [vmem:[#allocation7 + $0x228] sm:$0xff]
    %v408 = vld [vmem:[#allocation7 + $0x230] sm:$0xff]
    %v409 = vld [vmem:[#allocation7 + $0x238] sm:$0xff]
    %v410 = vld [vmem:[#allocation7 + $0x240] sm:$0xff]
    %v411 = vld [vmem:[#allocation7 + $0x248] sm:$0xff]
    %v412 = vld [vmem:[#allocation7 + $0x250] sm:$0xff]
    %v413 = vld [vmem:[#allocation7 + $0x258] sm:$0xff]
    %v414 = vld [vmem:[#allocation7 + $0x260] sm:$0xff]
    %v415 = vld [vmem:[#allocation7 + $0x268] sm:$0xff]
    %v416 = vld [vmem:[#allocation7 + $0x270] sm:$0xff]
    %v417 = vld [vmem:[#allocation7 + $0x278] sm:$0xff]
    %v418 = vld [vmem:[#allocation7 + $0x280] sm:$0xff]
    %v419 = vld [vmem:[#allocation7 + $0x288] sm:$0xff]
    %v420 = vld [vmem:[#allocation7 + $0x290] sm:$0xff]
    %v421 = vld [vmem:[#allocation7 + $0x298] sm:$0xff]
    %v422 = vld [vmem:[#allocation7 + $0x2a0] sm:$0xff]
    %v423 = vld [vmem:[#allocation7 + $0x2a8] sm:$0xff]
    %v424 = vld [vmem:[#allocation7 + $0x2b0] sm:$0xff]
    %v425 = vld [vmem:[#allocation7 + $0x2b8] sm:$0xff]
    %v426 = vld [vmem:[#allocation7 + $0x2c0] sm:$0xff]
    %v427 = vld [vmem:[#allocation7 + $0x2c8] sm:$0xff]
    %v428 = vld [vmem:[#allocation7 + $0x2d0] sm:$0xff]
    %v429 = vld [vmem:[#allocation7 + $0x2d8] sm:$0xff]
    %v430 = vld [vmem:[#allocation7 + $0x2e0] sm:$0xff]
    %v431 = vld [vmem:[#allocation7 + $0x2e8] sm:$0xff]
    %v432 = vld [vmem:[#allocation7 + $0x2f0] sm:$0xff]
    %v433 = vld [vmem:[#allocation7 + $0x2f8] sm:$0xff]
    %v434 = vld [vmem:[#allocation7 + $0x300] sm:$0xff]
    %v435 = vld [vmem:[#allocation7 + $0x308] sm:$0xff]
    %v436 = vld [vmem:[#allocation7 + $0x310] sm:$0xff]
    %v437 = vld [vmem:[#allocation7 + $0x318] sm:$0xff]
    %v438 = vld [vmem:[#allocation7 + $0x320] sm:$0xff]
    %v439 = vld [vmem:[#allocation7 + $0x328] sm:$0xff]
    %v440 = vld [vmem:[#allocation7 + $0x330] sm:$0xff]
    %v441 = vld [vmem:[#allocation7 + $0x338] sm:$0xff]
    %v442 = vld [vmem:[#allocation7 + $0x340] sm:$0xff]
    %v443 = vld [vmem:[#allocation7 + $0x348] sm:$0xff]
    %v444 = vld [vmem:[#allocation7 + $0x350] sm:$0xff]
    %v445 = vld [vmem:[#allocation7 + $0x358] sm:$0xff]
    %v446 = vld [vmem:[#allocation7 + $0x360] sm:$0xff]
    %v447 = vld [vmem:[#allocation7 + $0x368] sm:$0xff]
    %v448 = vld [vmem:[#allocation7 + $0x370] sm:$0xff]
    %v449 = vld [vmem:[#allocation7 + $0x378] sm:$0xff]
    %v450 = vld [vmem:[#allocation7 + $0x380] sm:$0xff]
    %v451 = vld [vmem:[#allocation7 + $0x388] sm:$0xff]
    %v452 = vld [vmem:[#allocation7 + $0x390] sm:$0xff]
    %v453 = vld [vmem:[#allocation7 + $0x398] sm:$0xff]
    %v454 = vld [vmem:[#allocation7 + $0x3a0] sm:$0xff]
    %v455 = vld [vmem:[#allocation7 + $0x3a8] sm:$0xff]
    %v456 = vld [vmem:[#allocation7 + $0x3b0] sm:$0xff]
    %v457 = vld [vmem:[#allocation7 + $0x3b8] sm:$0xff]
    %v458 = vld [vmem:[#allocation7 + $0x3c0] sm:$0xff]
    %v459 = vld [vmem:[#allocation7 + $0x3c8] sm:$0xff]
    %v460 = vld [vmem:[#allocation7 + $0x3d0] sm:$0xff]
    %v461 = vld [vmem:[#allocation7 + $0x3d8] sm:$0xff]
    %v462 = vld [vmem:[#allocation7 + $0x3e0] sm:$0xff]
    %v463 = vld [vmem:[#allocation7 + $0x3e8] sm:$0xff]
    %v464 = vld [vmem:[#allocation7 + $0x3f0] sm:$0xff]
    %v465 = vld [vmem:[#allocation7 + $0x3f8] sm:$0xff]
    %v466 = vld [vmem:[#allocation9] sm:$0xf]
    %v468 = vperm.slane %v466, 0
    %v469 = vperm.slane %v466, 1
    %v470 = vperm.slane %v466, 2
    %v471 = vperm.slane %v466, 3
    %v604 = vunpack.c.l.b16 %v338
    %v605 = vunpack.c.h.b16 %v338
    %v606 = vunpack.c.l.b16 %v339
    %v607 = vunpack.c.h.b16 %v339
    %v608 = vunpack.c.l.b16 %v340
    %v609 = vunpack.c.h.b16 %v340
    %v610 = vunpack.c.l.b16 %v341
    %v611 = vunpack.c.h.b16 %v341
    %v612 = vunpack.c.l.b16 %v342
    %v613 = vunpack.c.h.b16 %v342
    %v614 = vunpack.c.l.b16 %v343
    %v615 = vunpack.c.h.b16 %v343
    %v616 = vunpack.c.l.b16 %v344
    %v617 = vunpack.c.h.b16 %v344
    %v618 = vunpack.c.l.b16 %v345
    %v619 = vunpack.c.h.b16 %v345
    %v620 = vunpack.c.l.b16 %v346
    %v621 = vunpack.c.h.b16 %v346
    %v622 = vunpack.c.l.b16 %v347
    %v623 = vunpack.c.h.b16 %v347
    %v624 = vunpack.c.l.b16 %v348
    %v625 = vunpack.c.h.b16 %v348
    %v626 = vunpack.c.l.b16 %v349
    %v627 = vunpack.c.h.b16 %v349
    %v628 = vunpack.c.l.b16 %v350
    %v629 = vunpack.c.h.b16 %v350
    %v630 = vunpack.c.l.b16 %v351
    %v631 = vunpack.c.h.b16 %v351
    %v632 = vunpack.c.l.b16 %v352
    %v633 = vunpack.c.h.b16 %v352
    %v634 = vunpack.c.l.b16 %v353
    %v635 = vunpack.c.h.b16 %v353
    %v636 = vunpack.c.l.b16 %v354
    %v637 = vunpack.c.h.b16 %v354
    %v638 = vunpack.c.l.b16 %v355
    %v639 = vunpack.c.h.b16 %v355
    %v640 = vunpack.c.l.b16 %v356
    %v641 = vunpack.c.h.b16 %v356
    %v642 = vunpack.c.l.b16 %v357
    %v643 = vunpack.c.h.b16 %v357
    %v644 = vunpack.c.l.b16 %v358
    %v645 = vunpack.c.h.b16 %v358
    %v646 = vunpack.c.l.b16 %v359
    %v647 = vunpack.c.h.b16 %v359
    %v648 = vunpack.c.l.b16 %v360
    %v649 = vunpack.c.h.b16 %v360
    %v650 = vunpack.c.l.b16 %v361
    %v651 = vunpack.c.h.b16 %v361
    %v652 = vunpack.c.l.b16 %v362
    %v653 = vunpack.c.h.b16 %v362
    %v654 = vunpack.c.l.b16 %v363
    %v655 = vunpack.c.h.b16 %v363
    %v656 = vunpack.c.l.b16 %v364
    %v657 = vunpack.c.h.b16 %v364
    %v658 = vunpack.c.l.b16 %v365
    %v659 = vunpack.c.h.b16 %v365
    %v660 = vunpack.c.l.b16 %v366
    %v661 = vunpack.c.h.b16 %v366
    %v662 = vunpack.c.l.b16 %v367
    %v663 = vunpack.c.h.b16 %v367
    %v664 = vunpack.c.l.b16 %v368
    %v665 = vunpack.c.h.b16 %v368
    %v666 = vunpack.c.l.b16 %v369
    %v667 = vunpack.c.h.b16 %v369
    %v668 = vunpack.c.l.b16 %v370
    %v669 = vunpack.c.h.b16 %v370
    %v670 = vunpack.c.l.b16 %v371
    %v671 = vunpack.c.h.b16 %v371
    %v672 = vunpack.c.l.b16 %v372
    %v673 = vunpack.c.h.b16 %v372
    %v674 = vunpack.c.l.b16 %v373
    %v675 = vunpack.c.h.b16 %v373
    %v676 = vunpack.c.l.b16 %v374
    %v677 = vunpack.c.h.b16 %v374
    %v678 = vunpack.c.l.b16 %v375
    %v679 = vunpack.c.h.b16 %v375
    %v680 = vunpack.c.l.b16 %v376
    %v681 = vunpack.c.h.b16 %v376
    %v682 = vunpack.c.l.b16 %v377
    %v683 = vunpack.c.h.b16 %v377
    %v684 = vunpack.c.l.b16 %v378
    %v685 = vunpack.c.h.b16 %v378
    %v686 = vunpack.c.l.b16 %v379
    %v687 = vunpack.c.h.b16 %v379
    %v688 = vunpack.c.l.b16 %v380
    %v689 = vunpack.c.h.b16 %v380
    %v690 = vunpack.c.l.b16 %v381
    %v691 = vunpack.c.h.b16 %v381
    %v692 = vunpack.c.l.b16 %v382
    %v693 = vunpack.c.h.b16 %v382
    %v694 = vunpack.c.l.b16 %v383
    %v695 = vunpack.c.h.b16 %v383
    %v696 = vunpack.c.l.b16 %v384
    %v697 = vunpack.c.h.b16 %v384
    %v698 = vunpack.c.l.b16 %v385
    %v699 = vunpack.c.h.b16 %v385
    %v700 = vunpack.c.l.b16 %v386
    %v701 = vunpack.c.h.b16 %v386
    %v702 = vunpack.c.l.b16 %v387
    %v703 = vunpack.c.h.b16 %v387
    %v704 = vunpack.c.l.b16 %v388
    %v705 = vunpack.c.h.b16 %v388
    %v706 = vunpack.c.l.b16 %v389
    %v707 = vunpack.c.h.b16 %v389
    %v708 = vunpack.c.l.b16 %v390
    %v709 = vunpack.c.h.b16 %v390
    %v710 = vunpack.c.l.b16 %v391
    %v711 = vunpack.c.h.b16 %v391
    %v712 = vunpack.c.l.b16 %v392
    %v713 = vunpack.c.h.b16 %v392
    %v714 = vunpack.c.l.b16 %v393
    %v715 = vunpack.c.h.b16 %v393
    %v716 = vunpack.c.l.b16 %v394
    %v717 = vunpack.c.h.b16 %v394
    %v718 = vunpack.c.l.b16 %v395
    %v719 = vunpack.c.h.b16 %v395
    %v720 = vunpack.c.l.b16 %v396
    %v721 = vunpack.c.h.b16 %v396
    %v722 = vunpack.c.l.b16 %v397
    %v723 = vunpack.c.h.b16 %v397
    %v724 = vunpack.c.l.b16 %v398
    %v725 = vunpack.c.h.b16 %v398
    %v726 = vunpack.c.l.b16 %v399
    %v727 = vunpack.c.h.b16 %v399
    %v728 = vunpack.c.l.b16 %v400
    %v729 = vunpack.c.h.b16 %v400
    %v730 = vunpack.c.l.b16 %v401
    %v731 = vunpack.c.h.b16 %v401
    %v732 = vunpack.c.l.b16 %v402
    %v733 = vunpack.c.h.b16 %v402
    %v734 = vunpack.c.l.b16 %v403
    %v735 = vunpack.c.h.b16 %v403
    %v736 = vunpack.c.l.b16 %v404
    %v737 = vunpack.c.h.b16 %v404
    %v738 = vunpack.c.l.b16 %v405
    %v739 = vunpack.c.h.b16 %v405
    %v740 = vunpack.c.l.b16 %v406
    %v741 = vunpack.c.h.b16 %v406
    %v742 = vunpack.c.l.b16 %v407
    %v743 = vunpack.c.h.b16 %v407
    %v744 = vunpack.c.l.b16 %v408
    %v745 = vunpack.c.h.b16 %v408
    %v746 = vunpack.c.l.b16 %v409
    %v747 = vunpack.c.h.b16 %v409
    %v748 = vunpack.c.l.b16 %v410
    %v749 = vunpack.c.h.b16 %v410
    %v750 = vunpack.c.l.b16 %v411
    %v751 = vunpack.c.h.b16 %v411
    %v752 = vunpack.c.l.b16 %v412
    %v753 = vunpack.c.h.b16 %v412
    %v754 = vunpack.c.l.b16 %v413
    %v755 = vunpack.c.h.b16 %v413
    %v756 = vunpack.c.l.b16 %v414
    %v757 = vunpack.c.h.b16 %v414
    %v758 = vunpack.c.l.b16 %v415
    %v759 = vunpack.c.h.b16 %v415
    %v760 = vunpack.c.l.b16 %v416
    %v761 = vunpack.c.h.b16 %v416
    %v762 = vunpack.c.l.b16 %v417
    %v763 = vunpack.c.h.b16 %v417
    %v764 = vunpack.c.l.b16 %v418
    %v765 = vunpack.c.h.b16 %v418
    %v766 = vunpack.c.l.b16 %v419
    %v767 = vunpack.c.h.b16 %v419
    %v768 = vunpack.c.l.b16 %v420
    %v769 = vunpack.c.h.b16 %v420
    %v770 = vunpack.c.l.b16 %v421
    %v771 = vunpack.c.h.b16 %v421
    %v772 = vunpack.c.l.b16 %v422
    %v773 = vunpack.c.h.b16 %v422
    %v774 = vunpack.c.l.b16 %v423
    %v775 = vunpack.c.h.b16 %v423
    %v776 = vunpack.c.l.b16 %v424
    %v777 = vunpack.c.h.b16 %v424
    %v778 = vunpack.c.l.b16 %v425
    %v779 = vunpack.c.h.b16 %v425
    %v780 = vunpack.c.l.b16 %v426
    %v781 = vunpack.c.h.b16 %v426
    %v782 = vunpack.c.l.b16 %v427
    %v783 = vunpack.c.h.b16 %v427
    %v784 = vunpack.c.l.b16 %v428
    %v785 = vunpack.c.h.b16 %v428
    %v786 = vunpack.c.l.b16 %v429
    %v787 = vunpack.c.h.b16 %v429
    %v788 = vunpack.c.l.b16 %v430
    %v789 = vunpack.c.h.b16 %v430
    %v790 = vunpack.c.l.b16 %v431
    %v791 = vunpack.c.h.b16 %v431
    %v792 = vunpack.c.l.b16 %v432
    %v793 = vunpack.c.h.b16 %v432
    %v794 = vunpack.c.l.b16 %v433
    %v795 = vunpack.c.h.b16 %v433
    %v796 = vunpack.c.l.b16 %v434
    %v797 = vunpack.c.h.b16 %v434
    %v798 = vunpack.c.l.b16 %v435
    %v799 = vunpack.c.h.b16 %v435
    %v800 = vunpack.c.l.b16 %v436
    %v801 = vunpack.c.h.b16 %v436
    %v802 = vunpack.c.l.b16 %v437
    %v803 = vunpack.c.h.b16 %v437
    %v804 = vunpack.c.l.b16 %v438
    %v805 = vunpack.c.h.b16 %v438
    %v806 = vunpack.c.l.b16 %v439
    %v807 = vunpack.c.h.b16 %v439
    %v808 = vunpack.c.l.b16 %v440
    %v809 = vunpack.c.h.b16 %v440
    %v810 = vunpack.c.l.b16 %v441
    %v811 = vunpack.c.h.b16 %v441
    %v812 = vunpack.c.l.b16 %v442
    %v813 = vunpack.c.h.b16 %v442
    %v814 = vunpack.c.l.b16 %v443
    %v815 = vunpack.c.h.b16 %v443
    %v816 = vunpack.c.l.b16 %v444
    %v817 = vunpack.c.h.b16 %v444
    %v818 = vunpack.c.l.b16 %v445
    %v819 = vunpack.c.h.b16 %v445
    %v820 = vunpack.c.l.b16 %v446
    %v821 = vunpack.c.h.b16 %v446
    %v822 = vunpack.c.l.b16 %v447
    %v823 = vunpack.c.h.b16 %v447
    %v824 = vunpack.c.l.b16 %v448
    %v825 = vunpack.c.h.b16 %v448
    %v826 = vunpack.c.l.b16 %v449
    %v827 = vunpack.c.h.b16 %v449
    %v828 = vunpack.c.l.b16 %v450
    %v829 = vunpack.c.h.b16 %v450
    %v830 = vunpack.c.l.b16 %v451
    %v831 = vunpack.c.h.b16 %v451
    %v832 = vunpack.c.l.b16 %v452
    %v833 = vunpack.c.h.b16 %v452
    %v834 = vunpack.c.l.b16 %v453
    %v835 = vunpack.c.h.b16 %v453
    %v836 = vunpack.c.l.b16 %v454
    %v837 = vunpack.c.h.b16 %v454
    %v838 = vunpack.c.l.b16 %v455
    %v839 = vunpack.c.h.b16 %v455
    %v840 = vunpack.c.l.b16 %v456
    %v841 = vunpack.c.h.b16 %v456
    %v842 = vunpack.c.l.b16 %v457
    %v843 = vunpack.c.h.b16 %v457
    %v844 = vunpack.c.l.b16 %v458
    %v845 = vunpack.c.h.b16 %v458
    %v846 = vunpack.c.l.b16 %v459
    %v847 = vunpack.c.h.b16 %v459
    %v848 = vunpack.c.l.b16 %v460
    %v849 = vunpack.c.h.b16 %v460
    %v850 = vunpack.c.l.b16 %v461
    %v851 = vunpack.c.h.b16 %v461
    %v852 = vunpack.c.l.b16 %v462
    %v853 = vunpack.c.h.b16 %v462
    %v854 = vunpack.c.l.b16 %v463
    %v855 = vunpack.c.h.b16 %v463
    %v856 = vunpack.c.l.b16 %v464
    %v857 = vunpack.c.h.b16 %v464
    %v858 = vunpack.c.l.b16 %v465
    %v859 = vunpack.c.h.b16 %v465
    %v860 = vpack.c.b16 %v608, %v604
    %v861 = vpack.c.b16 %v609, %v605
    %v862 = vpack.c.b16 %v610, %v606
    %v863 = vpack.c.b16 %v611, %v607
    %v864 = vpack.c.b16 %v616, %v612
    %v865 = vpack.c.b16 %v617, %v613
    %v866 = vpack.c.b16 %v618, %v614
    %v867 = vpack.c.b16 %v619, %v615
    %v868 = vpack.c.b16 %v624, %v620
    %v869 = vpack.c.b16 %v625, %v621
    %v870 = vpack.c.b16 %v626, %v622
    %v871 = vpack.c.b16 %v627, %v623
    %v872 = vpack.c.b16 %v632, %v628
    %v873 = vpack.c.b16 %v633, %v629
    %v874 = vpack.c.b16 %v634, %v630
    %v875 = vpack.c.b16 %v635, %v631
    %v876 = vpack.c.b16 %v640, %v636
    %v877 = vpack.c.b16 %v641, %v637
    %v878 = vpack.c.b16 %v642, %v638
    %v879 = vpack.c.b16 %v643, %v639
    %v880 = vpack.c.b16 %v648, %v644
    %v881 = vpack.c.b16 %v649, %v645
    %v882 = vpack.c.b16 %v650, %v646
    %v883 = vpack.c.b16 %v651, %v647
    %v884 = vpack.c.b16 %v656, %v652
    %v885 = vpack.c.b16 %v657, %v653
    %v886 = vpack.c.b16 %v658, %v654
    %v887 = vpack.c.b16 %v659, %v655
    %v888 = vpack.c.b16 %v664, %v660
    %v889 = vpack.c.b16 %v665, %v661
    %v890 = vpack.c.b16 %v666, %v662
    %v891 = vpack.c.b16 %v667, %v663
    %v892 = vpack.c.b16 %v672, %v668
    %v893 = vpack.c.b16 %v673, %v669
    %v894 = vpack.c.b16 %v674, %v670
    %v895 = vpack.c.b16 %v675, %v671
    %v896 = vpack.c.b16 %v680, %v676
    %v897 = vpack.c.b16 %v681, %v677
    %v898 = vpack.c.b16 %v682, %v678
    %v899 = vpack.c.b16 %v683, %v679
    %v900 = vpack.c.b16 %v688, %v684
    %v901 = vpack.c.b16 %v689, %v685
    %v902 = vpack.c.b16 %v690, %v686
    %v903 = vpack.c.b16 %v691, %v687
    %v904 = vpack.c.b16 %v696, %v692
    %v905 = vpack.c.b16 %v697, %v693
    %v906 = vpack.c.b16 %v698, %v694
    %v907 = vpack.c.b16 %v699, %v695
    %v908 = vpack.c.b16 %v704, %v700
    %v909 = vpack.c.b16 %v705, %v701
    %v910 = vpack.c.b16 %v706, %v702
    %v911 = vpack.c.b16 %v707, %v703
    %v912 = vpack.c.b16 %v712, %v708
    %v913 = vpack.c.b16 %v713, %v709
    %v914 = vpack.c.b16 %v714, %v710
    %v915 = vpack.c.b16 %v715, %v711
    %v916 = vpack.c.b16 %v720, %v716
    %v917 = vpack.c.b16 %v721, %v717
    %v918 = vpack.c.b16 %v722, %v718
    %v919 = vpack.c.b16 %v723, %v719
    %v920 = vpack.c.b16 %v728, %v724
    %v921 = vpack.c.b16 %v729, %v725
    %v922 = vpack.c.b16 %v730, %v726
    %v923 = vpack.c.b16 %v731, %v727
    %v924 = vpack.c.b16 %v736, %v732
    %v925 = vpack.c.b16 %v737, %v733
    %v926 = vpack.c.b16 %v738, %v734
    %v927 = vpack.c.b16 %v739, %v735
    %v928 = vpack.c.b16 %v744, %v740
    %v929 = vpack.c.b16 %v745, %v741
    %v930 = vpack.c.b16 %v746, %v742
    %v931 = vpack.c.b16 %v747, %v743
    %v932 = vpack.c.b16 %v752, %v748
    %v933 = vpack.c.b16 %v753, %v749
    %v934 = vpack.c.b16 %v754, %v750
    %v935 = vpack.c.b16 %v755, %v751
    %v936 = vpack.c.b16 %v760, %v756
    %v937 = vpack.c.b16 %v761, %v757
    %v938 = vpack.c.b16 %v762, %v758
    %v939 = vpack.c.b16 %v763, %v759
    %v940 = vpack.c.b16 %v768, %v764
    %v941 = vpack.c.b16 %v769, %v765
    %v942 = vpack.c.b16 %v770, %v766
    %v943 = vpack.c.b16 %v771, %v767
    %v944 = vpack.c.b16 %v776, %v772
    %v945 = vpack.c.b16 %v777, %v773
    %v946 = vpack.c.b16 %v778, %v774
    %v947 = vpack.c.b16 %v779, %v775
    %v948 = vpack.c.b16 %v784, %v780
    %v949 = vpack.c.b16 %v785, %v781
    %v950 = vpack.c.b16 %v786, %v782
    %v951 = vpack.c.b16 %v787, %v783
    %v952 = vpack.c.b16 %v792, %v788
    %v953 = vpack.c.b16 %v793, %v789
    %v954 = vpack.c.b16 %v794, %v790
    %v955 = vpack.c.b16 %v795, %v791
    %v956 = vpack.c.b16 %v800, %v796
    %v957 = vpack.c.b16 %v801, %v797
    %v958 = vpack.c.b16 %v802, %v798
    %v959 = vpack.c.b16 %v803, %v799
    %v960 = vpack.c.b16 %v808, %v804
    %v961 = vpack.c.b16 %v809, %v805
    %v962 = vpack.c.b16 %v810, %v806
    %v963 = vpack.c.b16 %v811, %v807
    %v964 = vpack.c.b16 %v816, %v812
    %v965 = vpack.c.b16 %v817, %v813
    %v966 = vpack.c.b16 %v818, %v814
    %v967 = vpack.c.b16 %v819, %v815
    %v968 = vpack.c.b16 %v824, %v820
    %v969 = vpack.c.b16 %v825, %v821
    %v970 = vpack.c.b16 %v826, %v822
    %v971 = vpack.c.b16 %v827, %v823
    %v972 = vpack.c.b16 %v832, %v828
    %v973 = vpack.c.b16 %v833, %v829
    %v974 = vpack.c.b16 %v834, %v830
    %v975 = vpack.c.b16 %v835, %v831
    %v976 = vpack.c.b16 %v840, %v836
    %v977 = vpack.c.b16 %v841, %v837
    %v978 = vpack.c.b16 %v842, %v838
    %v979 = vpack.c.b16 %v843, %v839
    %v980 = vpack.c.b16 %v848, %v844
    %v981 = vpack.c.b16 %v849, %v845
    %v982 = vpack.c.b16 %v850, %v846
    %v983 = vpack.c.b16 %v851, %v847
    %v984 = vpack.c.b16 %v856, %v852
    %v985 = vpack.c.b16 %v857, %v853
    %v986 = vpack.c.b16 %v858, %v854
    %v987 = vpack.c.b16 %v859, %v855
    %1116 = vmatpush.bf16.msra.mxu0 %v888
    %1117 = vmatpush.bf16.msra.mxu0 %v884
    %1118 = vmatpush.bf16.msra.mxu0 %v880
    %1119 = vmatpush.bf16.msra.mxu0 %v876
    %1120 = vmatpush.bf16.msra.mxu0 %v872
    %1121 = vmatpush.bf16.msra.mxu0 %v868
    %1122 = vmatpush.bf16.msra.mxu0 %v864
    %1123 = vmatpush.bf16.msra.mxu0 %v860
    %1124 = vmatmul.bf16.gmra.mxu0 %v334
    %v1125 = vpop.f32.mrf.mxu0
    %v1126 = vadd.f32 %v468, %v1125
    %v1127 = vpop.f32.mrf.mxu0
    %1128 = vdwg.mxu0
    %1129 = vmatpush.bf16.msra.mxu0 %v920
    %1130 = vmatpush.bf16.msra.mxu0 %v916
    %1131 = vmatpush.bf16.msra.mxu0 %v912
    %1132 = vmatpush.bf16.msra.mxu0 %v908
    %1133 = vmatpush.bf16.msra.mxu0 %v904
    %1134 = vmatpush.bf16.msra.mxu0 %v900
    %1135 = vmatpush.bf16.msra.mxu0 %v896
    %1136 = vmatpush.bf16.msra.mxu0 %v892
    %1137 = vmatmul.bf16.gmra.mxu0 %v335
    %v1138 = vpop.f32.mrf.mxu0
    %v1139 = vadd.f32 %v1126, %v1138
    %v1140 = vpop.f32.mrf.mxu0
    %1141 = vdwg.mxu0
    %1142 = vmatpush.bf16.msra.mxu0 %v952
    %1143 = vmatpush.bf16.msra.mxu0 %v948
    %1144 = vmatpush.bf16.msra.mxu0 %v944
    %1145 = vmatpush.bf16.msra.mxu0 %v940
    %1146 = vmatpush.bf16.msra.mxu0 %v936
    %1147 = vmatpush.bf16.msra.mxu0 %v932
    %1148 = vmatpush.bf16.msra.mxu0 %v928
    %1149 = vmatpush.bf16.msra.mxu0 %v924
    %1150 = vmatmul.bf16.gmra.mxu0 %v336
    %v1151 = vpop.f32.mrf.mxu0
    %v1152 = vadd.f32 %v1139, %v1151
    %v1153 = vpop.f32.mrf.mxu0
    %1154 = vdwg.mxu0
    %1155 = vmatpush.bf16.msra.mxu0 %v984
    %1156 = vmatpush.bf16.msra.mxu0 %v980
    %1157 = vmatpush.bf16.msra.mxu0 %v976
    %1158 = vmatpush.bf16.msra.mxu0 %v972
    %1159 = vmatpush.bf16.msra.mxu0 %v968
    %1160 = vmatpush.bf16.msra.mxu0 %v964
    %1161 = vmatpush.bf16.msra.mxu0 %v960
    %1162 = vmatpush.bf16.msra.mxu0 %v956
    %1163 = vmatmul.bf16.gmra.mxu0 %v337
    %v1164 = vpop.f32.mrf.mxu0
    %v1165 = vadd.f32 %v1152, %v1164
    %v1166 = vpop.f32.mrf.mxu0
    %1167 = vdwg.mxu0
    %1168 = vmatpush.bf16.msra.mxu0 %v889
    %1169 = vmatpush.bf16.msra.mxu0 %v885
    %1170 = vmatpush.bf16.msra.mxu0 %v881
    %1171 = vmatpush.bf16.msra.mxu0 %v877
    %1172 = vmatpush.bf16.msra.mxu0 %v873
    %1173 = vmatpush.bf16.msra.mxu0 %v869
    %1174 = vmatpush.bf16.msra.mxu0 %v865
    %1175 = vmatpush.bf16.msra.mxu0 %v861
    %1176 = vmatmul.bf16.gmra.mxu0 %v334
    %v1177 = vpop.f32.mrf.mxu0
    %v1178 = vadd.f32 %v469, %v1177
    %v1179 = vpop.f32.mrf.mxu0
    %1180 = vdwg.mxu0
    %1181 = vmatpush.bf16.msra.mxu0 %v921
    %1182 = vmatpush.bf16.msra.mxu0 %v917
    %1183 = vmatpush.bf16.msra.mxu0 %v913
    %1184 = vmatpush.bf16.msra.mxu0 %v909
    %1185 = vmatpush.bf16.msra.mxu0 %v905
    %1186 = vmatpush.bf16.msra.mxu0 %v901
    %1187 = vmatpush.bf16.msra.mxu0 %v897
    %1188 = vmatpush.bf16.msra.mxu0 %v893
    %1189 = vmatmul.bf16.gmra.mxu0 %v335
    %v1190 = vpop.f32.mrf.mxu0
    %v1191 = vadd.f32 %v1178, %v1190
    %v1192 = vpop.f32.mrf.mxu0
    %1193 = vdwg.mxu0
    %1194 = vmatpush.bf16.msra.mxu0 %v953
    %1195 = vmatpush.bf16.msra.mxu0 %v949
    %1196 = vmatpush.bf16.msra.mxu0 %v945
    %1197 = vmatpush.bf16.msra.mxu0 %v941
    %1198 = vmatpush.bf16.msra.mxu0 %v937
    %1199 = vmatpush.bf16.msra.mxu0 %v933
    %1200 = vmatpush.bf16.msra.mxu0 %v929
    %1201 = vmatpush.bf16.msra.mxu0 %v925
    %1202 = vmatmul.bf16.gmra.mxu0 %v336
    %v1203 = vpop.f32.mrf.mxu0
    %v1204 = vadd.f32 %v1191, %v1203
    %v1205 = vpop.f32.mrf.mxu0
    %1206 = vdwg.mxu0
    %1207 = vmatpush.bf16.msra.mxu0 %v985
    %1208 = vmatpush.bf16.msra.mxu0 %v981
    %1209 = vmatpush.bf16.msra.mxu0 %v977
    %1210 = vmatpush.bf16.msra.mxu0 %v973
    %1211 = vmatpush.bf16.msra.mxu0 %v969
    %1212 = vmatpush.bf16.msra.mxu0 %v965
    %1213 = vmatpush.bf16.msra.mxu0 %v961
    %1214 = vmatpush.bf16.msra.mxu0 %v957
    %1215 = vmatmul.bf16.gmra.mxu0 %v337
    %v1216 = vpop.f32.mrf.mxu0
    %v1217 = vadd.f32 %v1204, %v1216
    %v1218 = vpop.f32.mrf.mxu0
    %1219 = vdwg.mxu0
    %1220 = vmatpush.bf16.msra.mxu0 %v890
    %1221 = vmatpush.bf16.msra.mxu0 %v886
    %1222 = vmatpush.bf16.msra.mxu0 %v882
    %1223 = vmatpush.bf16.msra.mxu0 %v878
    %1224 = vmatpush.bf16.msra.mxu0 %v874
    %1225 = vmatpush.bf16.msra.mxu0 %v870
    %1226 = vmatpush.bf16.msra.mxu0 %v866
    %1227 = vmatpush.bf16.msra.mxu0 %v862
    %1228 = vmatmul.bf16.gmra.mxu0 %v334
    %v1229 = vpop.f32.mrf.mxu0
    %v1230 = vadd.f32 %v470, %v1229
    %v1231 = vpop.f32.mrf.mxu0
    %1232 = vdwg.mxu0
    %1233 = vmatpush.bf16.msra.mxu0 %v922
    %1234 = vmatpush.bf16.msra.mxu0 %v918
    %1235 = vmatpush.bf16.msra.mxu0 %v914
    %1236 = vmatpush.bf16.msra.mxu0 %v910
    %1237 = vmatpush.bf16.msra.mxu0 %v906
    %1238 = vmatpush.bf16.msra.mxu0 %v902
    %1239 = vmatpush.bf16.msra.mxu0 %v898
    %1240 = vmatpush.bf16.msra.mxu0 %v894
    %1241 = vmatmul.bf16.gmra.mxu0 %v335
    %v1242 = vpop.f32.mrf.mxu0
    %v1243 = vadd.f32 %v1230, %v1242
    %v1244 = vpop.f32.mrf.mxu0
    %1245 = vdwg.mxu0
    %1246 = vmatpush.bf16.msra.mxu0 %v954
    %1247 = vmatpush.bf16.msra.mxu0 %v950
    %1248 = vmatpush.bf16.msra.mxu0 %v946
    %1249 = vmatpush.bf16.msra.mxu0 %v942
    %1250 = vmatpush.bf16.msra.mxu0 %v938
    %1251 = vmatpush.bf16.msra.mxu0 %v934
    %1252 = vmatpush.bf16.msra.mxu0 %v930
    %1253 = vmatpush.bf16.msra.mxu0 %v926
    %1254 = vmatmul.bf16.gmra.mxu0 %v336
    %v1255 = vpop.f32.mrf.mxu0
    %v1256 = vadd.f32 %v1243, %v1255
    %v1257 = vpop.f32.mrf.mxu0
    %1258 = vdwg.mxu0
    %1259 = vmatpush.bf16.msra.mxu0 %v986
    %1260 = vmatpush.bf16.msra.mxu0 %v982
    %1261 = vmatpush.bf16.msra.mxu0 %v978
    %1262 = vmatpush.bf16.msra.mxu0 %v974
    %1263 = vmatpush.bf16.msra.mxu0 %v970
    %1264 = vmatpush.bf16.msra.mxu0 %v966
    %1265 = vmatpush.bf16.msra.mxu0 %v962
    %1266 = vmatpush.bf16.msra.mxu0 %v958
    %1267 = vmatmul.bf16.gmra.mxu0 %v337
    %v1268 = vpop.f32.mrf.mxu0
    %v1269 = vadd.f32 %v1256, %v1268
    %v1270 = vpop.f32.mrf.mxu0
    %1271 = vdwg.mxu0
    %1272 = vmatpush.bf16.msra.mxu0 %v891
    %1273 = vmatpush.bf16.msra.mxu0 %v887
    %1274 = vmatpush.bf16.msra.mxu0 %v883
    %1275 = vmatpush.bf16.msra.mxu0 %v879
    %1276 = vmatpush.bf16.msra.mxu0 %v875
    %1277 = vmatpush.bf16.msra.mxu0 %v871
    %1278 = vmatpush.bf16.msra.mxu0 %v867
    %1279 = vmatpush.bf16.msra.mxu0 %v863
    %1280 = vmatmul.bf16.gmra.mxu0 %v334
    %v1281 = vpop.f32.mrf.mxu0
    %v1282 = vadd.f32 %v471, %v1281
    %v1283 = vpop.f32.mrf.mxu0
    %1284 = vdwg.mxu0
    %1285 = vmatpush.bf16.msra.mxu0 %v923
    %1286 = vmatpush.bf16.msra.mxu0 %v919
    %1287 = vmatpush.bf16.msra.mxu0 %v915
    %1288 = vmatpush.bf16.msra.mxu0 %v911
    %1289 = vmatpush.bf16.msra.mxu0 %v907
    %1290 = vmatpush.bf16.msra.mxu0 %v903
    %1291 = vmatpush.bf16.msra.mxu0 %v899
    %1292 = vmatpush.bf16.msra.mxu0 %v895
    %1293 = vmatmul.bf16.gmra.mxu0 %v335
    %v1294 = vpop.f32.mrf.mxu0
    %v1295 = vadd.f32 %v1282, %v1294
    %v1296 = vpop.f32.mrf.mxu0
    %1297 = vdwg.mxu0
    %1298 = vmatpush.bf16.msra.mxu0 %v955
    %1299 = vmatpush.bf16.msra.mxu0 %v951
    %1300 = vmatpush.bf16.msra.mxu0 %v947
    %1301 = vmatpush.bf16.msra.mxu0 %v943
    %1302 = vmatpush.bf16.msra.mxu0 %v939
    %1303 = vmatpush.bf16.msra.mxu0 %v935
    %1304 = vmatpush.bf16.msra.mxu0 %v931
    %1305 = vmatpush.bf16.msra.mxu0 %v927
    %1306 = vmatmul.bf16.gmra.mxu0 %v336
    %v1307 = vpop.f32.mrf.mxu0
    %v1308 = vadd.f32 %v1295, %v1307
    %v1309 = vpop.f32.mrf.mxu0
    %1310 = vdwg.mxu0
    %1311 = vmatpush.bf16.msra.mxu0 %v987
    %1312 = vmatpush.bf16.msra.mxu0 %v983
    %1313 = vmatpush.bf16.msra.mxu0 %v979
    %1314 = vmatpush.bf16.msra.mxu0 %v975
    %1315 = vmatpush.bf16.msra.mxu0 %v971
    %1316 = vmatpush.bf16.msra.mxu0 %v967
    %1317 = vmatpush.bf16.msra.mxu0 %v963
    %1318 = vmatpush.bf16.msra.mxu0 %v959
    %1319 = vmatmul.bf16.gmra.mxu0 %v337
    %v1320 = vpop.f32.mrf.mxu0
    %v1321 = vadd.f32 %v1308, %v1320
    %v1322 = vpop.f32.mrf.mxu0
    %1323 = vdwg.mxu0
    %vm1324 = vcmp.ge.f32.partialorder %v1165, 0.0
    %vm1325 = vcmp.ge.f32.partialorder %v1217, 0.0
    %vm1326 = vcmp.ge.f32.partialorder %v1269, 0.0
    %vm1327 = vcmp.ge.f32.partialorder %v1321, 0.0
    %v1328 = vmul.f32 %v1165, 0.2
    %v1329 = vmul.f32 %v1217, 0.2
    %v1330 = vmul.f32 %v1269, 0.2
    %v1331 = vmul.f32 %v1321, 0.2
    %v1332 = vsel %vm1324, %v1165, %v1328
    %v1333 = vsel %vm1325, %v1217, %v1329
    %v1334 = vsel %vm1326, %v1269, %v1330
    %v1335 = vsel %vm1327, %v1321, %v1331
    %v1336 = vmul.f32 %v1332, %v1332
    %v1337 = vmul.f32 %v1333, %v1333
    %v1338 = vmul.f32 %v1334, %v1334
    %v1339 = vmul.f32 %v1335, %v1335
    %v1340 = vld [vmem:[#allocation10] sm:$0xff]
    %v1341 = vld [vmem:[#allocation10 + $0x8] sm:$0xff]
    %v1342 = vld [vmem:[#allocation10 + $0x10] sm:$0xff]
    %v1343 = vld [vmem:[#allocation10 + $0x18] sm:$0xff]
    %v1344 = vld [vmem:[#allocation10 + $0x20] sm:$0xff]
    %v1345 = vld [vmem:[#allocation10 + $0x28] sm:$0xff]
    %v1346 = vld [vmem:[#allocation10 + $0x30] sm:$0xff]
    %v1347 = vld [vmem:[#allocation10 + $0x38] sm:$0xff]
    %v1348 = vld [vmem:[#allocation10 + $0x40] sm:$0xff]
    %v1349 = vld [vmem:[#allocation10 + $0x48] sm:$0xff]
    %v1350 = vld [vmem:[#allocation10 + $0x50] sm:$0xff]
    %v1351 = vld [vmem:[#allocation10 + $0x58] sm:$0xff]
    %v1352 = vld [vmem:[#allocation10 + $0x60] sm:$0xff]
    %v1353 = vld [vmem:[#allocation10 + $0x68] sm:$0xff]
    %v1354 = vld [vmem:[#allocation10 + $0x70] sm:$0xff]
    %v1355 = vld [vmem:[#allocation10 + $0x78] sm:$0xff]
    %v1356 = vld [vmem:[#allocation10 + $0x80] sm:$0xff]
    %v1357 = vld [vmem:[#allocation10 + $0x88] sm:$0xff]
    %v1358 = vld [vmem:[#allocation10 + $0x90] sm:$0xff]
    %v1359 = vld [vmem:[#allocation10 + $0x98] sm:$0xff]
    %v1360 = vld [vmem:[#allocation10 + $0xa0] sm:$0xff]
    %v1361 = vld [vmem:[#allocation10 + $0xa8] sm:$0xff]
    %v1362 = vld [vmem:[#allocation10 + $0xb0] sm:$0xff]
    %v1363 = vld [vmem:[#allocation10 + $0xb8] sm:$0xff]
    %v1364 = vld [vmem:[#allocation10 + $0xc0] sm:$0xff]
    %v1365 = vld [vmem:[#allocation10 + $0xc8] sm:$0xff]
    %v1366 = vld [vmem:[#allocation10 + $0xd0] sm:$0xff]
    %v1367 = vld [vmem:[#allocation10 + $0xd8] sm:$0xff]
    %v1368 = vld [vmem:[#allocation10 + $0xe0] sm:$0xff]
    %v1369 = vld [vmem:[#allocation10 + $0xe8] sm:$0xff]
    %v1370 = vld [vmem:[#allocation10 + $0xf0] sm:$0xff]
    %v1371 = vld [vmem:[#allocation10 + $0xf8] sm:$0xff]
    %v1372 = vld [vmem:[#allocation10 + $0x100] sm:$0xff]
    %v1373 = vld [vmem:[#allocation10 + $0x108] sm:$0xff]
    %v1374 = vld [vmem:[#allocation10 + $0x110] sm:$0xff]
    %v1375 = vld [vmem:[#allocation10 + $0x118] sm:$0xff]
    %v1376 = vld [vmem:[#allocation10 + $0x120] sm:$0xff]
    %v1377 = vld [vmem:[#allocation10 + $0x128] sm:$0xff]
    %v1378 = vld [vmem:[#allocation10 + $0x130] sm:$0xff]
    %v1379 = vld [vmem:[#allocation10 + $0x138] sm:$0xff]
    %v1380 = vld [vmem:[#allocation10 + $0x140] sm:$0xff]
    %v1381 = vld [vmem:[#allocation10 + $0x148] sm:$0xff]
    %v1382 = vld [vmem:[#allocation10 + $0x150] sm:$0xff]
    %v1383 = vld [vmem:[#allocation10 + $0x158] sm:$0xff]
    %v1384 = vld [vmem:[#allocation10 + $0x160] sm:$0xff]
    %v1385 = vld [vmem:[#allocation10 + $0x168] sm:$0xff]
    %v1386 = vld [vmem:[#allocation10 + $0x170] sm:$0xff]
    %v1387 = vld [vmem:[#allocation10 + $0x178] sm:$0xff]
    %v1388 = vld [vmem:[#allocation10 + $0x180] sm:$0xff]
    %v1389 = vld [vmem:[#allocation10 + $0x188] sm:$0xff]
    %v1390 = vld [vmem:[#allocation10 + $0x190] sm:$0xff]
    %v1391 = vld [vmem:[#allocation10 + $0x198] sm:$0xff]
    %v1392 = vld [vmem:[#allocation10 + $0x1a0] sm:$0xff]
    %v1393 = vld [vmem:[#allocation10 + $0x1a8] sm:$0xff]
    %v1394 = vld [vmem:[#allocation10 + $0x1b0] sm:$0xff]
    %v1395 = vld [vmem:[#allocation10 + $0x1b8] sm:$0xff]
    %v1396 = vld [vmem:[#allocation10 + $0x1c0] sm:$0xff]
    %v1397 = vld [vmem:[#allocation10 + $0x1c8] sm:$0xff]
    %v1398 = vld [vmem:[#allocation10 + $0x1d0] sm:$0xff]
    %v1399 = vld [vmem:[#allocation10 + $0x1d8] sm:$0xff]
    %v1400 = vld [vmem:[#allocation10 + $0x1e0] sm:$0xff]
    %v1401 = vld [vmem:[#allocation10 + $0x1e8] sm:$0xff]
    %v1402 = vld [vmem:[#allocation10 + $0x1f0] sm:$0xff]
    %v1403 = vld [vmem:[#allocation10 + $0x1f8] sm:$0xff]
    %v1404 = vld [vmem:[#allocation10 + $0x200] sm:$0xff]
    %v1405 = vld [vmem:[#allocation10 + $0x208] sm:$0xff]
    %v1406 = vld [vmem:[#allocation10 + $0x210] sm:$0xff]
    %v1407 = vld [vmem:[#allocation10 + $0x218] sm:$0xff]
    %v1408 = vld [vmem:[#allocation10 + $0x220] sm:$0xff]
    %v1409 = vld [vmem:[#allocation10 + $0x228] sm:$0xff]
    %v1410 = vld [vmem:[#allocation10 + $0x230] sm:$0xff]
    %v1411 = vld [vmem:[#allocation10 + $0x238] sm:$0xff]
    %v1412 = vld [vmem:[#allocation10 + $0x240] sm:$0xff]
    %v1413 = vld [vmem:[#allocation10 + $0x248] sm:$0xff]
    %v1414 = vld [vmem:[#allocation10 + $0x250] sm:$0xff]
    %v1415 = vld [vmem:[#allocation10 + $0x258] sm:$0xff]
    %v1416 = vld [vmem:[#allocation10 + $0x260] sm:$0xff]
    %v1417 = vld [vmem:[#allocation10 + $0x268] sm:$0xff]
    %v1418 = vld [vmem:[#allocation10 + $0x270] sm:$0xff]
    %v1419 = vld [vmem:[#allocation10 + $0x278] sm:$0xff]
    %v1420 = vld [vmem:[#allocation10 + $0x280] sm:$0xff]
    %v1421 = vld [vmem:[#allocation10 + $0x288] sm:$0xff]
    %v1422 = vld [vmem:[#allocation10 + $0x290] sm:$0xff]
    %v1423 = vld [vmem:[#allocation10 + $0x298] sm:$0xff]
    %v1424 = vld [vmem:[#allocation10 + $0x2a0] sm:$0xff]
    %v1425 = vld [vmem:[#allocation10 + $0x2a8] sm:$0xff]
    %v1426 = vld [vmem:[#allocation10 + $0x2b0] sm:$0xff]
    %v1427 = vld [vmem:[#allocation10 + $0x2b8] sm:$0xff]
    %v1428 = vld [vmem:[#allocation10 + $0x2c0] sm:$0xff]
    %v1429 = vld [vmem:[#allocation10 + $0x2c8] sm:$0xff]
    %v1430 = vld [vmem:[#allocation10 + $0x2d0] sm:$0xff]
    %v1431 = vld [vmem:[#allocation10 + $0x2d8] sm:$0xff]
    %v1432 = vld [vmem:[#allocation10 + $0x2e0] sm:$0xff]
    %v1433 = vld [vmem:[#allocation10 + $0x2e8] sm:$0xff]
    %v1434 = vld [vmem:[#allocation10 + $0x2f0] sm:$0xff]
    %v1435 = vld [vmem:[#allocation10 + $0x2f8] sm:$0xff]
    %v1436 = vld [vmem:[#allocation10 + $0x300] sm:$0xff]
    %v1437 = vld [vmem:[#allocation10 + $0x308] sm:$0xff]
    %v1438 = vld [vmem:[#allocation10 + $0x310] sm:$0xff]
    %v1439 = vld [vmem:[#allocation10 + $0x318] sm:$0xff]
    %v1440 = vld [vmem:[#allocation10 + $0x320] sm:$0xff]
    %v1441 = vld [vmem:[#allocation10 + $0x328] sm:$0xff]
    %v1442 = vld [vmem:[#allocation10 + $0x330] sm:$0xff]
    %v1443 = vld [vmem:[#allocation10 + $0x338] sm:$0xff]
    %v1444 = vld [vmem:[#allocation10 + $0x340] sm:$0xff]
    %v1445 = vld [vmem:[#allocation10 + $0x348] sm:$0xff]
    %v1446 = vld [vmem:[#allocation10 + $0x350] sm:$0xff]
    %v1447 = vld [vmem:[#allocation10 + $0x358] sm:$0xff]
    %v1448 = vld [vmem:[#allocation10 + $0x360] sm:$0xff]
    %v1449 = vld [vmem:[#allocation10 + $0x368] sm:$0xff]
    %v1450 = vld [vmem:[#allocation10 + $0x370] sm:$0xff]
    %v1451 = vld [vmem:[#allocation10 + $0x378] sm:$0xff]
    %v1452 = vld [vmem:[#allocation10 + $0x380] sm:$0xff]
    %v1453 = vld [vmem:[#allocation10 + $0x388] sm:$0xff]
    %v1454 = vld [vmem:[#allocation10 + $0x390] sm:$0xff]
    %v1455 = vld [vmem:[#allocation10 + $0x398] sm:$0xff]
    %v1456 = vld [vmem:[#allocation10 + $0x3a0] sm:$0xff]
    %v1457 = vld [vmem:[#allocation10 + $0x3a8] sm:$0xff]
    %v1458 = vld [vmem:[#allocation10 + $0x3b0] sm:$0xff]
    %v1459 = vld [vmem:[#allocation10 + $0x3b8] sm:$0xff]
    %v1460 = vld [vmem:[#allocation10 + $0x3c0] sm:$0xff]
    %v1461 = vld [vmem:[#allocation10 + $0x3c8] sm:$0xff]
    %v1462 = vld [vmem:[#allocation10 + $0x3d0] sm:$0xff]
    %v1463 = vld [vmem:[#allocation10 + $0x3d8] sm:$0xff]
    %v1464 = vld [vmem:[#allocation10 + $0x3e0] sm:$0xff]
    %v1465 = vld [vmem:[#allocation10 + $0x3e8] sm:$0xff]
    %v1466 = vld [vmem:[#allocation10 + $0x3f0] sm:$0xff]
    %v1467 = vld [vmem:[#allocation10 + $0x3f8] sm:$0xff]
    %v1468 = vld [vmem:[#allocation10 + $0x400] sm:$0xff]
    %v1469 = vld [vmem:[#allocation10 + $0x408] sm:$0xff]
    %v1470 = vld [vmem:[#allocation10 + $0x410] sm:$0xff]
    %v1471 = vld [vmem:[#allocation10 + $0x418] sm:$0xff]
    %v1472 = vld [vmem:[#allocation10 + $0x420] sm:$0xff]
    %v1473 = vld [vmem:[#allocation10 + $0x428] sm:$0xff]
    %v1474 = vld [vmem:[#allocation10 + $0x430] sm:$0xff]
    %v1475 = vld [vmem:[#allocation10 + $0x438] sm:$0xff]
    %v1476 = vld [vmem:[#allocation10 + $0x440] sm:$0xff]
    %v1477 = vld [vmem:[#allocation10 + $0x448] sm:$0xff]
    %v1478 = vld [vmem:[#allocation10 + $0x450] sm:$0xff]
    %v1479 = vld [vmem:[#allocation10 + $0x458] sm:$0xff]
    %v1480 = vld [vmem:[#allocation10 + $0x460] sm:$0xff]
    %v1481 = vld [vmem:[#allocation10 + $0x468] sm:$0xff]
    %v1482 = vld [vmem:[#allocation10 + $0x470] sm:$0xff]
    %v1483 = vld [vmem:[#allocation10 + $0x478] sm:$0xff]
    %v1484 = vld [vmem:[#allocation10 + $0x480] sm:$0xff]
    %v1485 = vld [vmem:[#allocation10 + $0x488] sm:$0xff]
    %v1486 = vld [vmem:[#allocation10 + $0x490] sm:$0xff]
    %v1487 = vld [vmem:[#allocation10 + $0x498] sm:$0xff]
    %v1488 = vld [vmem:[#allocation10 + $0x4a0] sm:$0xff]
    %v1489 = vld [vmem:[#allocation10 + $0x4a8] sm:$0xff]
    %v1490 = vld [vmem:[#allocation10 + $0x4b0] sm:$0xff]
    %v1491 = vld [vmem:[#allocation10 + $0x4b8] sm:$0xff]
    %v1492 = vld [vmem:[#allocation10 + $0x4c0] sm:$0xff]
    %v1493 = vld [vmem:[#allocation10 + $0x4c8] sm:$0xff]
    %v1494 = vld [vmem:[#allocation10 + $0x4d0] sm:$0xff]
    %v1495 = vld [vmem:[#allocation10 + $0x4d8] sm:$0xff]
    %v1496 = vld [vmem:[#allocation10 + $0x4e0] sm:$0xff]
    %v1497 = vld [vmem:[#allocation10 + $0x4e8] sm:$0xff]
    %v1498 = vld [vmem:[#allocation10 + $0x4f0] sm:$0xff]
    %v1499 = vld [vmem:[#allocation10 + $0x4f8] sm:$0xff]
    %v1500 = vld [vmem:[#allocation10 + $0x500] sm:$0xff]
    %v1501 = vld [vmem:[#allocation10 + $0x508] sm:$0xff]
    %v1502 = vld [vmem:[#allocation10 + $0x510] sm:$0xff]
    %v1503 = vld [vmem:[#allocation10 + $0x518] sm:$0xff]
    %v1504 = vld [vmem:[#allocation10 + $0x520] sm:$0xff]
    %v1505 = vld [vmem:[#allocation10 + $0x528] sm:$0xff]
    %v1506 = vld [vmem:[#allocation10 + $0x530] sm:$0xff]
    %v1507 = vld [vmem:[#allocation10 + $0x538] sm:$0xff]
    %v1508 = vld [vmem:[#allocation10 + $0x540] sm:$0xff]
    %v1509 = vld [vmem:[#allocation10 + $0x548] sm:$0xff]
    %v1510 = vld [vmem:[#allocation10 + $0x550] sm:$0xff]
    %v1511 = vld [vmem:[#allocation10 + $0x558] sm:$0xff]
    %v1512 = vld [vmem:[#allocation10 + $0x560] sm:$0xff]
    %v1513 = vld [vmem:[#allocation10 + $0x568] sm:$0xff]
    %v1514 = vld [vmem:[#allocation10 + $0x570] sm:$0xff]
    %v1515 = vld [vmem:[#allocation10 + $0x578] sm:$0xff]
    %v1516 = vld [vmem:[#allocation10 + $0x580] sm:$0xff]
    %v1517 = vld [vmem:[#allocation10 + $0x588] sm:$0xff]
    %v1518 = vld [vmem:[#allocation10 + $0x590] sm:$0xff]
    %v1519 = vld [vmem:[#allocation10 + $0x598] sm:$0xff]
    %v1520 = vld [vmem:[#allocation10 + $0x5a0] sm:$0xff]
    %v1521 = vld [vmem:[#allocation10 + $0x5a8] sm:$0xff]
    %v1522 = vld [vmem:[#allocation10 + $0x5b0] sm:$0xff]
    %v1523 = vld [vmem:[#allocation10 + $0x5b8] sm:$0xff]
    %v1524 = vld [vmem:[#allocation10 + $0x5c0] sm:$0xff]
    %v1525 = vld [vmem:[#allocation10 + $0x5c8] sm:$0xff]
    %v1526 = vld [vmem:[#allocation10 + $0x5d0] sm:$0xff]
    %v1527 = vld [vmem:[#allocation10 + $0x5d8] sm:$0xff]
    %v1528 = vld [vmem:[#allocation10 + $0x5e0] sm:$0xff]
    %v1529 = vld [vmem:[#allocation10 + $0x5e8] sm:$0xff]
    %v1530 = vld [vmem:[#allocation10 + $0x5f0] sm:$0xff]
    %v1531 = vld [vmem:[#allocation10 + $0x5f8] sm:$0xff]
    %v1532 = vld [vmem:[#allocation10 + $0x600] sm:$0xff]
    %v1533 = vld [vmem:[#allocation10 + $0x608] sm:$0xff]
    %v1534 = vld [vmem:[#allocation10 + $0x610] sm:$0xff]
    %v1535 = vld [vmem:[#allocation10 + $0x618] sm:$0xff]
    %v1536 = vld [vmem:[#allocation10 + $0x620] sm:$0xff]
    %v1537 = vld [vmem:[#allocation10 + $0x628] sm:$0xff]
    %v1538 = vld [vmem:[#allocation10 + $0x630] sm:$0xff]
    %v1539 = vld [vmem:[#allocation10 + $0x638] sm:$0xff]
    %v1540 = vld [vmem:[#allocation10 + $0x640] sm:$0xff]
    %v1541 = vld [vmem:[#allocation10 + $0x648] sm:$0xff]
    %v1542 = vld [vmem:[#allocation10 + $0x650] sm:$0xff]
    %v1543 = vld [vmem:[#allocation10 + $0x658] sm:$0xff]
    %v1544 = vld [vmem:[#allocation10 + $0x660] sm:$0xff]
    %v1545 = vld [vmem:[#allocation10 + $0x668] sm:$0xff]
    %v1546 = vld [vmem:[#allocation10 + $0x670] sm:$0xff]
    %v1547 = vld [vmem:[#allocation10 + $0x678] sm:$0xff]
    %v1548 = vld [vmem:[#allocation10 + $0x680] sm:$0xff]
    %v1549 = vld [vmem:[#allocation10 + $0x688] sm:$0xff]
    %v1550 = vld [vmem:[#allocation10 + $0x690] sm:$0xff]
    %v1551 = vld [vmem:[#allocation10 + $0x698] sm:$0xff]
    %v1552 = vld [vmem:[#allocation10 + $0x6a0] sm:$0xff]
    %v1553 = vld [vmem:[#allocation10 + $0x6a8] sm:$0xff]
    %v1554 = vld [vmem:[#allocation10 + $0x6b0] sm:$0xff]
    %v1555 = vld [vmem:[#allocation10 + $0x6b8] sm:$0xff]
    %v1556 = vld [vmem:[#allocation10 + $0x6c0] sm:$0xff]
    %v1557 = vld [vmem:[#allocation10 + $0x6c8] sm:$0xff]
    %v1558 = vld [vmem:[#allocation10 + $0x6d0] sm:$0xff]
    %v1559 = vld [vmem:[#allocation10 + $0x6d8] sm:$0xff]
    %v1560 = vld [vmem:[#allocation10 + $0x6e0] sm:$0xff]
    %v1561 = vld [vmem:[#allocation10 + $0x6e8] sm:$0xff]
    %v1562 = vld [vmem:[#allocation10 + $0x6f0] sm:$0xff]
    %v1563 = vld [vmem:[#allocation10 + $0x6f8] sm:$0xff]
    %v1564 = vld [vmem:[#allocation10 + $0x700] sm:$0xff]
    %v1565 = vld [vmem:[#allocation10 + $0x708] sm:$0xff]
    %v1566 = vld [vmem:[#allocation10 + $0x710] sm:$0xff]
    %v1567 = vld [vmem:[#allocation10 + $0x718] sm:$0xff]
    %v1568 = vld [vmem:[#allocation10 + $0x720] sm:$0xff]
    %v1569 = vld [vmem:[#allocation10 + $0x728] sm:$0xff]
    %v1570 = vld [vmem:[#allocation10 + $0x730] sm:$0xff]
    %v1571 = vld [vmem:[#allocation10 + $0x738] sm:$0xff]
    %v1572 = vld [vmem:[#allocation10 + $0x740] sm:$0xff]
    %v1573 = vld [vmem:[#allocation10 + $0x748] sm:$0xff]
    %v1574 = vld [vmem:[#allocation10 + $0x750] sm:$0xff]
    %v1575 = vld [vmem:[#allocation10 + $0x758] sm:$0xff]
    %v1576 = vld [vmem:[#allocation10 + $0x760] sm:$0xff]
    %v1577 = vld [vmem:[#allocation10 + $0x768] sm:$0xff]
    %v1578 = vld [vmem:[#allocation10 + $0x770] sm:$0xff]
    %v1579 = vld [vmem:[#allocation10 + $0x778] sm:$0xff]
    %v1580 = vld [vmem:[#allocation10 + $0x780] sm:$0xff]
    %v1581 = vld [vmem:[#allocation10 + $0x788] sm:$0xff]
    %v1582 = vld [vmem:[#allocation10 + $0x790] sm:$0xff]
    %v1583 = vld [vmem:[#allocation10 + $0x798] sm:$0xff]
    %v1584 = vld [vmem:[#allocation10 + $0x7a0] sm:$0xff]
    %v1585 = vld [vmem:[#allocation10 + $0x7a8] sm:$0xff]
    %v1586 = vld [vmem:[#allocation10 + $0x7b0] sm:$0xff]
    %v1587 = vld [vmem:[#allocation10 + $0x7b8] sm:$0xff]
    %v1588 = vld [vmem:[#allocation10 + $0x7c0] sm:$0xff]
    %v1589 = vld [vmem:[#allocation10 + $0x7c8] sm:$0xff]
    %v1590 = vld [vmem:[#allocation10 + $0x7d0] sm:$0xff]
    %v1591 = vld [vmem:[#allocation10 + $0x7d8] sm:$0xff]
    %v1592 = vld [vmem:[#allocation10 + $0x7e0] sm:$0xff]
    %v1593 = vld [vmem:[#allocation10 + $0x7e8] sm:$0xff]
    %v1594 = vld [vmem:[#allocation10 + $0x7f0] sm:$0xff]
    %v1595 = vld [vmem:[#allocation10 + $0x7f8] sm:$0xff]
    %1596 = vmatpush.msra.mxu0 %v1400
    %1597 = vmatpush.msra.mxu0 %v1396
    %1598 = vmatpush.msra.mxu0 %v1392
    %1599 = vmatpush.msra.mxu0 %v1388
    %1600 = vmatpush.msra.mxu0 %v1384
    %1601 = vmatpush.msra.mxu0 %v1380
    %1602 = vmatpush.msra.mxu0 %v1376
    %1603 = vmatpush.msra.mxu0 %v1372
    %1604 = vmatpush.msra.mxu0 %v1368
    %1605 = vmatpush.msra.mxu0 %v1364
    %1606 = vmatpush.msra.mxu0 %v1360
    %1607 = vmatpush.msra.mxu0 %v1356
    %1608 = vmatpush.msra.mxu0 %v1352
    %1609 = vmatpush.msra.mxu0 %v1348
    %1610 = vmatpush.msra.mxu0 %v1344
    %1611 = vmatpush.msra.mxu0 %v1340
    %1612 = vmatmul.f32.gmra.mxu0 %v1336
    %v1613 = vpop.f32.mrf.mxu0
    %v1614 = vadd.f32 1e-08, %v1613
    %1615 = vdwg.mxu0
    %1616 = vmatpush.msra.mxu0 %v1464
    %1617 = vmatpush.msra.mxu0 %v1460
    %1618 = vmatpush.msra.mxu0 %v1456
    %1619 = vmatpush.msra.mxu0 %v1452
    %1620 = vmatpush.msra.mxu0 %v1448
    %1621 = vmatpush.msra.mxu0 %v1444
    %1622 = vmatpush.msra.mxu0 %v1440
    %1623 = vmatpush.msra.mxu0 %v1436
    %1624 = vmatpush.msra.mxu0 %v1432
    %1625 = vmatpush.msra.mxu0 %v1428
    %1626 = vmatpush.msra.mxu0 %v1424
    %1627 = vmatpush.msra.mxu0 %v1420
    %1628 = vmatpush.msra.mxu0 %v1416
    %1629 = vmatpush.msra.mxu0 %v1412
    %1630 = vmatpush.msra.mxu0 %v1408
    %1631 = vmatpush.msra.mxu0 %v1404
    %1632 = vmatmul.f32.gmra.mxu0 %v1337
    %v1633 = vpop.f32.mrf.mxu0
    %v1634 = vadd.f32 %v1614, %v1633
    %1635 = vdwg.mxu0
    %1636 = vmatpush.msra.mxu0 %v1528
    %1637 = vmatpush.msra.mxu0 %v1524
    %1638 = vmatpush.msra.mxu0 %v1520
    %1639 = vmatpush.msra.mxu0 %v1516
    %1640 = vmatpush.msra.mxu0 %v1512
    %1641 = vmatpush.msra.mxu0 %v1508
    %1642 = vmatpush.msra.mxu0 %v1504
    %1643 = vmatpush.msra.mxu0 %v1500
    %1644 = vmatpush.msra.mxu0 %v1496
    %1645 = vmatpush.msra.mxu0 %v1492
    %1646 = vmatpush.msra.mxu0 %v1488
    %1647 = vmatpush.msra.mxu0 %v1484
    %1648 = vmatpush.msra.mxu0 %v1480
    %1649 = vmatpush.msra.mxu0 %v1476
    %1650 = vmatpush.msra.mxu0 %v1472
    %1651 = vmatpush.msra.mxu0 %v1468
    %1652 = vmatmul.f32.gmra.mxu0 %v1338
    %v1653 = vpop.f32.mrf.mxu0
    %v1654 = vadd.f32 %v1634, %v1653
    %1655 = vdwg.mxu0
    %1656 = vmatpush.msra.mxu0 %v1592
    %1657 = vmatpush.msra.mxu0 %v1588
    %1658 = vmatpush.msra.mxu0 %v1584
    %1659 = vmatpush.msra.mxu0 %v1580
    %1660 = vmatpush.msra.mxu0 %v1576
    %1661 = vmatpush.msra.mxu0 %v1572
    %1662 = vmatpush.msra.mxu0 %v1568
    %1663 = vmatpush.msra.mxu0 %v1564
    %1664 = vmatpush.msra.mxu0 %v1560
    %1665 = vmatpush.msra.mxu0 %v1556
    %1666 = vmatpush.msra.mxu0 %v1552
    %1667 = vmatpush.msra.mxu0 %v1548
    %1668 = vmatpush.msra.mxu0 %v1544
    %1669 = vmatpush.msra.mxu0 %v1540
    %1670 = vmatpush.msra.mxu0 %v1536
    %1671 = vmatpush.msra.mxu0 %v1532
    %1672 = vmatmul.f32.gmra.mxu0 %v1339
    %v1673 = vpop.f32.mrf.mxu0
    %v1674 = vadd.f32 %v1654, %v1673
    %1675 = vdwg.mxu0
    %1676 = vmatpush.msra.mxu0 %v1401
    %1677 = vmatpush.msra.mxu0 %v1397
    %1678 = vmatpush.msra.mxu0 %v1393
    %1679 = vmatpush.msra.mxu0 %v1389
    %1680 = vmatpush.msra.mxu0 %v1385
    %1681 = vmatpush.msra.mxu0 %v1381
    %1682 = vmatpush.msra.mxu0 %v1377
    %1683 = vmatpush.msra.mxu0 %v1373
    %1684 = vmatpush.msra.mxu0 %v1369
    %1685 = vmatpush.msra.mxu0 %v1365
    %1686 = vmatpush.msra.mxu0 %v1361
    %1687 = vmatpush.msra.mxu0 %v1357
    %1688 = vmatpush.msra.mxu0 %v1353
    %1689 = vmatpush.msra.mxu0 %v1349
    %1690 = vmatpush.msra.mxu0 %v1345
    %1691 = vmatpush.msra.mxu0 %v1341
    %1692 = vmatmul.f32.gmra.mxu0 %v1336
    %v1693 = vpop.f32.mrf.mxu0
    %v1694 = vadd.f32 1e-08, %v1693
    %1695 = vdwg.mxu0
    %1696 = vmatpush.msra.mxu0 %v1465
    %1697 = vmatpush.msra.mxu0 %v1461
    %1698 = vmatpush.msra.mxu0 %v1457
    %1699 = vmatpush.msra.mxu0 %v1453
    %1700 = vmatpush.msra.mxu0 %v1449
    %1701 = vmatpush.msra.mxu0 %v1445
    %1702 = vmatpush.msra.mxu0 %v1441
    %1703 = vmatpush.msra.mxu0 %v1437
    %1704 = vmatpush.msra.mxu0 %v1433
    %1705 = vmatpush.msra.mxu0 %v1429
    %1706 = vmatpush.msra.mxu0 %v1425
    %1707 = vmatpush.msra.mxu0 %v1421
    %1708 = vmatpush.msra.mxu0 %v1417
    %1709 = vmatpush.msra.mxu0 %v1413
    %1710 = vmatpush.msra.mxu0 %v1409
    %1711 = vmatpush.msra.mxu0 %v1405
    %1712 = vmatmul.f32.gmra.mxu0 %v1337
    %v1713 = vpop.f32.mrf.mxu0
    %v1714 = vadd.f32 %v1694, %v1713
    %1715 = vdwg.mxu0
    %1716 = vmatpush.msra.mxu0 %v1529
    %1717 = vmatpush.msra.mxu0 %v1525
    %1718 = vmatpush.msra.mxu0 %v1521
    %1719 = vmatpush.msra.mxu0 %v1517
    %1720 = vmatpush.msra.mxu0 %v1513
    %1721 = vmatpush.msra.mxu0 %v1509
    %1722 = vmatpush.msra.mxu0 %v1505
    %1723 = vmatpush.msra.mxu0 %v1501
    %1724 = vmatpush.msra.mxu0 %v1497
    %1725 = vmatpush.msra.mxu0 %v1493
    %1726 = vmatpush.msra.mxu0 %v1489
    %1727 = vmatpush.msra.mxu0 %v1485
    %1728 = vmatpush.msra.mxu0 %v1481
    %1729 = vmatpush.msra.mxu0 %v1477
    %1730 = vmatpush.msra.mxu0 %v1473
    %1731 = vmatpush.msra.mxu0 %v1469
    %1732 = vmatmul.f32.gmra.mxu0 %v1338
    %v1733 = vpop.f32.mrf.mxu0
    %v1734 = vadd.f32 %v1714, %v1733
    %1735 = vdwg.mxu0
    %1736 = vmatpush.msra.mxu0 %v1593
    %1737 = vmatpush.msra.mxu0 %v1589
    %1738 = vmatpush.msra.mxu0 %v1585
    %1739 = vmatpush.msra.mxu0 %v1581
    %1740 = vmatpush.msra.mxu0 %v1577
    %1741 = vmatpush.msra.mxu0 %v1573
    %1742 = vmatpush.msra.mxu0 %v1569
    %1743 = vmatpush.msra.mxu0 %v1565
    %1744 = vmatpush.msra.mxu0 %v1561
    %1745 = vmatpush.msra.mxu0 %v1557
    %1746 = vmatpush.msra.mxu0 %v1553
    %1747 = vmatpush.msra.mxu0 %v1549
    %1748 = vmatpush.msra.mxu0 %v1545
    %1749 = vmatpush.msra.mxu0 %v1541
    %1750 = vmatpush.msra.mxu0 %v1537
    %1751 = vmatpush.msra.mxu0 %v1533
    %1752 = vmatmul.f32.gmra.mxu0 %v1339
    %v1753 = vpop.f32.mrf.mxu0
    %v1754 = vadd.f32 %v1734, %v1753
    %1755 = vdwg.mxu0
    %1756 = vmatpush.msra.mxu0 %v1402
    %1757 = vmatpush.msra.mxu0 %v1398
    %1758 = vmatpush.msra.mxu0 %v1394
    %1759 = vmatpush.msra.mxu0 %v1390
    %1760 = vmatpush.msra.mxu0 %v1386
    %1761 = vmatpush.msra.mxu0 %v1382
    %1762 = vmatpush.msra.mxu0 %v1378
    %1763 = vmatpush.msra.mxu0 %v1374
    %1764 = vmatpush.msra.mxu0 %v1370
    %1765 = vmatpush.msra.mxu0 %v1366
    %1766 = vmatpush.msra.mxu0 %v1362
    %1767 = vmatpush.msra.mxu0 %v1358
    %1768 = vmatpush.msra.mxu0 %v1354
    %1769 = vmatpush.msra.mxu0 %v1350
    %1770 = vmatpush.msra.mxu0 %v1346
    %1771 = vmatpush.msra.mxu0 %v1342
    %1772 = vmatmul.f32.gmra.mxu0 %v1336
    %v1773 = vpop.f32.mrf.mxu0
    %v1774 = vadd.f32 1e-08, %v1773
    %1775 = vdwg.mxu0
    %1776 = vmatpush.msra.mxu0 %v1466
    %1777 = vmatpush.msra.mxu0 %v1462
    %1778 = vmatpush.msra.mxu0 %v1458
    %1779 = vmatpush.msra.mxu0 %v1454
    %1780 = vmatpush.msra.mxu0 %v1450
    %1781 = vmatpush.msra.mxu0 %v1446
    %1782 = vmatpush.msra.mxu0 %v1442
    %1783 = vmatpush.msra.mxu0 %v1438
    %1784 = vmatpush.msra.mxu0 %v1434
    %1785 = vmatpush.msra.mxu0 %v1430
    %1786 = vmatpush.msra.mxu0 %v1426
    %1787 = vmatpush.msra.mxu0 %v1422
    %1788 = vmatpush.msra.mxu0 %v1418
    %1789 = vmatpush.msra.mxu0 %v1414
    %1790 = vmatpush.msra.mxu0 %v1410
    %1791 = vmatpush.msra.mxu0 %v1406
    %1792 = vmatmul.f32.gmra.mxu0 %v1337
    %v1793 = vpop.f32.mrf.mxu0
    %v1794 = vadd.f32 %v1774, %v1793
    %1795 = vdwg.mxu0
    %1796 = vmatpush.msra.mxu0 %v1530
    %1797 = vmatpush.msra.mxu0 %v1526
    %1798 = vmatpush.msra.mxu0 %v1522
    %1799 = vmatpush.msra.mxu0 %v1518
    %1800 = vmatpush.msra.mxu0 %v1514
    %1801 = vmatpush.msra.mxu0 %v1510
    %1802 = vmatpush.msra.mxu0 %v1506
    %1803 = vmatpush.msra.mxu0 %v1502
    %1804 = vmatpush.msra.mxu0 %v1498
    %1805 = vmatpush.msra.mxu0 %v1494
    %1806 = vmatpush.msra.mxu0 %v1490
    %1807 = vmatpush.msra.mxu0 %v1486
    %1808 = vmatpush.msra.mxu0 %v1482
    %1809 = vmatpush.msra.mxu0 %v1478
    %1810 = vmatpush.msra.mxu0 %v1474
    %1811 = vmatpush.msra.mxu0 %v1470
    %1812 = vmatmul.f32.gmra.mxu0 %v1338
    %v1813 = vpop.f32.mrf.mxu0
    %v1814 = vadd.f32 %v1794, %v1813
    %1815 = vdwg.mxu0
    %1816 = vmatpush.msra.mxu0 %v1594
    %1817 = vmatpush.msra.mxu0 %v1590
    %1818 = vmatpush.msra.mxu0 %v1586
    %1819 = vmatpush.msra.mxu0 %v1582
    %1820 = vmatpush.msra.mxu0 %v1578
    %1821 = vmatpush.msra.mxu0 %v1574
    %1822 = vmatpush.msra.mxu0 %v1570
    %1823 = vmatpush.msra.mxu0 %v1566
    %1824 = vmatpush.msra.mxu0 %v1562
    %1825 = vmatpush.msra.mxu0 %v1558
    %1826 = vmatpush.msra.mxu0 %v1554
    %1827 = vmatpush.msra.mxu0 %v1550
    %1828 = vmatpush.msra.mxu0 %v1546
    %1829 = vmatpush.msra.mxu0 %v1542
    %1830 = vmatpush.msra.mxu0 %v1538
    %1831 = vmatpush.msra.mxu0 %v1534
    %1832 = vmatmul.f32.gmra.mxu0 %v1339
    %v1833 = vpop.f32.mrf.mxu0
    %v1834 = vadd.f32 %v1814, %v1833
    %1835 = vdwg.mxu0
    %1836 = vmatpush.msra.mxu0 %v1403
    %1837 = vmatpush.msra.mxu0 %v1399
    %1838 = vmatpush.msra.mxu0 %v1395
    %1839 = vmatpush.msra.mxu0 %v1391
    %1840 = vmatpush.msra.mxu0 %v1387
    %1841 = vmatpush.msra.mxu0 %v1383
    %1842 = vmatpush.msra.mxu0 %v1379
    %1843 = vmatpush.msra.mxu0 %v1375
    %1844 = vmatpush.msra.mxu0 %v1371
    %1845 = vmatpush.msra.mxu0 %v1367
    %1846 = vmatpush.msra.mxu0 %v1363
    %1847 = vmatpush.msra.mxu0 %v1359
    %1848 = vmatpush.msra.mxu0 %v1355
    %1849 = vmatpush.msra.mxu0 %v1351
    %1850 = vmatpush.msra.mxu0 %v1347
    %1851 = vmatpush.msra.mxu0 %v1343
    %1852 = vmatmul.f32.gmra.mxu0 %v1336
    %v1853 = vpop.f32.mrf.mxu0
    %v1854 = vadd.f32 1e-08, %v1853
    %1855 = vdwg.mxu0
    %1856 = vmatpush.msra.mxu0 %v1467
    %1857 = vmatpush.msra.mxu0 %v1463
    %1858 = vmatpush.msra.mxu0 %v1459
    %1859 = vmatpush.msra.mxu0 %v1455
    %1860 = vmatpush.msra.mxu0 %v1451
    %1861 = vmatpush.msra.mxu0 %v1447
    %1862 = vmatpush.msra.mxu0 %v1443
    %1863 = vmatpush.msra.mxu0 %v1439
    %1864 = vmatpush.msra.mxu0 %v1435
    %1865 = vmatpush.msra.mxu0 %v1431
    %1866 = vmatpush.msra.mxu0 %v1427
    %1867 = vmatpush.msra.mxu0 %v1423
    %1868 = vmatpush.msra.mxu0 %v1419
    %1869 = vmatpush.msra.mxu0 %v1415
    %1870 = vmatpush.msra.mxu0 %v1411
    %1871 = vmatpush.msra.mxu0 %v1407
    %1872 = vmatmul.f32.gmra.mxu0 %v1337
    %v1873 = vpop.f32.mrf.mxu0
    %v1874 = vadd.f32 %v1854, %v1873
    %1875 = vdwg.mxu0
    %1876 = vmatpush.msra.mxu0 %v1531
    %1877 = vmatpush.msra.mxu0 %v1527
    %1878 = vmatpush.msra.mxu0 %v1523
    %1879 = vmatpush.msra.mxu0 %v1519
    %1880 = vmatpush.msra.mxu0 %v1515
    %1881 = vmatpush.msra.mxu0 %v1511
    %1882 = vmatpush.msra.mxu0 %v1507
    %1883 = vmatpush.msra.mxu0 %v1503
    %1884 = vmatpush.msra.mxu0 %v1499
    %1885 = vmatpush.msra.mxu0 %v1495
    %1886 = vmatpush.msra.mxu0 %v1491
    %1887 = vmatpush.msra.mxu0 %v1487
    %1888 = vmatpush.msra.mxu0 %v1483
    %1889 = vmatpush.msra.mxu0 %v1479
    %1890 = vmatpush.msra.mxu0 %v1475
    %1891 = vmatpush.msra.mxu0 %v1471
    %1892 = vmatmul.f32.gmra.mxu0 %v1338
    %v1893 = vpop.f32.mrf.mxu0
    %v1894 = vadd.f32 %v1874, %v1893
    %1895 = vdwg.mxu0
    %1896 = vmatpush.msra.mxu0 %v1595
    %1897 = vmatpush.msra.mxu0 %v1591
    %1898 = vmatpush.msra.mxu0 %v1587
    %1899 = vmatpush.msra.mxu0 %v1583
    %1900 = vmatpush.msra.mxu0 %v1579
    %1901 = vmatpush.msra.mxu0 %v1575
    %1902 = vmatpush.msra.mxu0 %v1571
    %1903 = vmatpush.msra.mxu0 %v1567
    %1904 = vmatpush.msra.mxu0 %v1563
    %1905 = vmatpush.msra.mxu0 %v1559
    %1906 = vmatpush.msra.mxu0 %v1555
    %1907 = vmatpush.msra.mxu0 %v1551
    %1908 = vmatpush.msra.mxu0 %v1547
    %1909 = vmatpush.msra.mxu0 %v1543
    %1910 = vmatpush.msra.mxu0 %v1539
    %1911 = vmatpush.msra.mxu0 %v1535
    %1912 = vmatmul.f32.gmra.mxu0 %v1339
    %v1913 = vpop.f32.mrf.mxu0
    %v1914 = vadd.f32 %v1894, %v1913
    %1915 = vdwg.mxu0
    %v1916 = vrsqrt.pop %v1674
    %v1917 = vmul.f32 %v1916, %v1674
    %v1918 = vmul.f32 %v1917, %v1916
    %v1919 = vmul.f32 0.5, %v1918
    %v1920 = vsub.f32 1.5, %v1919
    %v1921 = vmul.f32 %v1916, %v1920
    %vm1922 = vweird.f32 %v1674
    %vm1923 = vweird.f32 %v1916
    %vm1924 = vmor %vm1922, %vm1923
    %v1925 = vsel %vm1924, %v1916, %v1921
    %v1926 = vrsqrt.pop %v1754
    %v1927 = vmul.f32 %v1926, %v1754
    %v1928 = vmul.f32 %v1927, %v1926
    %v1929 = vmul.f32 0.5, %v1928
    %v1930 = vsub.f32 1.5, %v1929
    %v1931 = vmul.f32 %v1926, %v1930
    %vm1932 = vweird.f32 %v1754
    %vm1933 = vweird.f32 %v1926
    %vm1934 = vmor %vm1932, %vm1933
    %v1935 = vsel %vm1934, %v1926, %v1931
    %v1936 = vrsqrt.pop %v1834
    %v1937 = vmul.f32 %v1936, %v1834
    %v1938 = vmul.f32 %v1937, %v1936
    %v1939 = vmul.f32 0.5, %v1938
    %v1940 = vsub.f32 1.5, %v1939
    %v1941 = vmul.f32 %v1936, %v1940
    %vm1942 = vweird.f32 %v1834
    %vm1943 = vweird.f32 %v1936
    %vm1944 = vmor %vm1942, %vm1943
    %v1945 = vsel %vm1944, %v1936, %v1941
    %v1946 = vrsqrt.pop %v1914
    %v1947 = vmul.f32 %v1946, %v1914
    %v1948 = vmul.f32 %v1947, %v1946
    %v1949 = vmul.f32 0.5, %v1948
    %v1950 = vsub.f32 1.5, %v1949
    %v1951 = vmul.f32 %v1946, %v1950
    %vm1952 = vweird.f32 %v1914
    %vm1953 = vweird.f32 %v1946
    %vm1954 = vmor %vm1952, %vm1953
    %v1955 = vsel %vm1954, %v1946, %v1951
    %v1956 = vmul.f32 %v1332, %v1925
    %v1957 = vmul.f32 %v1333, %v1935
    %v1958 = vmul.f32 %v1334, %v1945
    %v1959 = vmul.f32 %v1335, %v1955
    %v1960 = vpack.c.bf16 %v1956, %v1956
    %v1961 = vpack.c.bf16 %v1957, %v1957
    %v1962 = vpack.c.bf16 %v1958, %v1958
    %v1963 = vpack.c.bf16 %v1959, %v1959
    %v1964 = vld [vmem:[#allocation12] sm:$0xf]
    %v1965 = vld [vmem:[#allocation12 + $0x4] sm:$0xf]
    %v1966 = vld [vmem:[#allocation12 + $0x8] sm:$0xf]
    %v1967 = vld [vmem:[#allocation12 + $0xc] sm:$0xf]
    %v1968 = vld [vmem:[#allocation12 + $0x10] sm:$0xf]
    %v1969 = vld [vmem:[#allocation12 + $0x14] sm:$0xf]
    %v1970 = vld [vmem:[#allocation12 + $0x18] sm:$0xf]
    %v1971 = vld [vmem:[#allocation12 + $0x1c] sm:$0xf]
    %v1972 = vld [vmem:[#allocation12 + $0x20] sm:$0xf]
    %v1973 = vld [vmem:[#allocation12 + $0x24] sm:$0xf]
    %v1974 = vld [vmem:[#allocation12 + $0x28] sm:$0xf]
    %v1975 = vld [vmem:[#allocation12 + $0x2c] sm:$0xf]
    %v1976 = vld [vmem:[#allocation12 + $0x30] sm:$0xf]
    %v1977 = vld [vmem:[#allocation12 + $0x34] sm:$0xf]
    %v1978 = vld [vmem:[#allocation12 + $0x38] sm:$0xf]
    %v1979 = vld [vmem:[#allocation12 + $0x3c] sm:$0xf]
    %v1980 = vld [vmem:[#allocation12 + $0x40] sm:$0xf]
    %v1981 = vld [vmem:[#allocation12 + $0x44] sm:$0xf]
    %v1982 = vld [vmem:[#allocation12 + $0x48] sm:$0xf]
    %v1983 = vld [vmem:[#allocation12 + $0x4c] sm:$0xf]
    %v1984 = vld [vmem:[#allocation12 + $0x50] sm:$0xf]
    %v1985 = vld [vmem:[#allocation12 + $0x54] sm:$0xf]
    %v1986 = vld [vmem:[#allocation12 + $0x58] sm:$0xf]
    %v1987 = vld [vmem:[#allocation12 + $0x5c] sm:$0xf]
    %v1988 = vld [vmem:[#allocation12 + $0x60] sm:$0xf]
    %v1989 = vld [vmem:[#allocation12 + $0x64] sm:$0xf]
    %v1990 = vld [vmem:[#allocation12 + $0x68] sm:$0xf]
    %v1991 = vld [vmem:[#allocation12 + $0x6c] sm:$0xf]
    %v1992 = vld [vmem:[#allocation12 + $0x70] sm:$0xf]
    %v1993 = vld [vmem:[#allocation12 + $0x74] sm:$0xf]
    %v1994 = vld [vmem:[#allocation12 + $0x78] sm:$0xf]
    %v1995 = vld [vmem:[#allocation12 + $0x7c] sm:$0xf]
    %v1996 = vld [vmem:[#allocation12 + $0x80] sm:$0xf]
    %v1997 = vld [vmem:[#allocation12 + $0x84] sm:$0xf]
    %v1998 = vld [vmem:[#allocation12 + $0x88] sm:$0xf]
    %v1999 = vld [vmem:[#allocation12 + $0x8c] sm:$0xf]
    %v2000 = vld [vmem:[#allocation12 + $0x90] sm:$0xf]
    %v2001 = vld [vmem:[#allocation12 + $0x94] sm:$0xf]
    %v2002 = vld [vmem:[#allocation12 + $0x98] sm:$0xf]
    %v2003 = vld [vmem:[#allocation12 + $0x9c] sm:$0xf]
    %v2004 = vld [vmem:[#allocation12 + $0xa0] sm:$0xf]
    %v2005 = vld [vmem:[#allocation12 + $0xa4] sm:$0xf]
    %v2006 = vld [vmem:[#allocation12 + $0xa8] sm:$0xf]
    %v2007 = vld [vmem:[#allocation12 + $0xac] sm:$0xf]
    %v2008 = vld [vmem:[#allocation12 + $0xb0] sm:$0xf]
    %v2009 = vld [vmem:[#allocation12 + $0xb4] sm:$0xf]
    %v2010 = vld [vmem:[#allocation12 + $0xb8] sm:$0xf]
    %v2011 = vld [vmem:[#allocation12 + $0xbc] sm:$0xf]
    %v2012 = vld [vmem:[#allocation12 + $0xc0] sm:$0xf]
    %v2013 = vld [vmem:[#allocation12 + $0xc4] sm:$0xf]
    %v2014 = vld [vmem:[#allocation12 + $0xc8] sm:$0xf]
    %v2015 = vld [vmem:[#allocation12 + $0xcc] sm:$0xf]
    %v2016 = vld [vmem:[#allocation12 + $0xd0] sm:$0xf]
    %v2017 = vld [vmem:[#allocation12 + $0xd4] sm:$0xf]
    %v2018 = vld [vmem:[#allocation12 + $0xd8] sm:$0xf]
    %v2019 = vld [vmem:[#allocation12 + $0xdc] sm:$0xf]
    %v2020 = vld [vmem:[#allocation12 + $0xe0] sm:$0xf]
    %v2021 = vld [vmem:[#allocation12 + $0xe4] sm:$0xf]
    %v2022 = vld [vmem:[#allocation12 + $0xe8] sm:$0xf]
    %v2023 = vld [vmem:[#allocation12 + $0xec] sm:$0xf]
    %v2024 = vld [vmem:[#allocation12 + $0xf0] sm:$0xf]
    %v2025 = vld [vmem:[#allocation12 + $0xf4] sm:$0xf]
    %v2026 = vld [vmem:[#allocation12 + $0xf8] sm:$0xf]
    %v2027 = vld [vmem:[#allocation12 + $0xfc] sm:$0xf]
    %v2028 = vld [vmem:[%s7] sm:$0x1]
    %v2030 = vperm.slane %v2028, 0
    %v2096 = vunpack.c.l.b16 %v1964
    %v2097 = vunpack.c.l.b16 %v1965
    %v2098 = vunpack.c.l.b16 %v1966
    %v2099 = vunpack.c.l.b16 %v1967
    %v2100 = vunpack.c.l.b16 %v1968
    %v2101 = vunpack.c.l.b16 %v1969
    %v2102 = vunpack.c.l.b16 %v1970
    %v2103 = vunpack.c.l.b16 %v1971
    %v2104 = vunpack.c.l.b16 %v1972
    %v2105 = vunpack.c.l.b16 %v1973
    %v2106 = vunpack.c.l.b16 %v1974
    %v2107 = vunpack.c.l.b16 %v1975
    %v2108 = vunpack.c.l.b16 %v1976
    %v2109 = vunpack.c.l.b16 %v1977
    %v2110 = vunpack.c.l.b16 %v1978
    %v2111 = vunpack.c.l.b16 %v1979
    %v2112 = vunpack.c.l.b16 %v1980
    %v2113 = vunpack.c.l.b16 %v1981
    %v2114 = vunpack.c.l.b16 %v1982
    %v2115 = vunpack.c.l.b16 %v1983
    %v2116 = vunpack.c.l.b16 %v1984
    %v2117 = vunpack.c.l.b16 %v1985
    %v2118 = vunpack.c.l.b16 %v1986
    %v2119 = vunpack.c.l.b16 %v1987
    %v2120 = vunpack.c.l.b16 %v1988
    %v2121 = vunpack.c.l.b16 %v1989
    %v2122 = vunpack.c.l.b16 %v1990
    %v2123 = vunpack.c.l.b16 %v1991
    %v2124 = vunpack.c.l.b16 %v1992
    %v2125 = vunpack.c.l.b16 %v1993
    %v2126 = vunpack.c.l.b16 %v1994
    %v2127 = vunpack.c.l.b16 %v1995
    %v2128 = vunpack.c.l.b16 %v1996
    %v2129 = vunpack.c.l.b16 %v1997
    %v2130 = vunpack.c.l.b16 %v1998
    %v2131 = vunpack.c.l.b16 %v1999
    %v2132 = vunpack.c.l.b16 %v2000
    %v2133 = vunpack.c.l.b16 %v2001
    %v2134 = vunpack.c.l.b16 %v2002
    %v2135 = vunpack.c.l.b16 %v2003
    %v2136 = vunpack.c.l.b16 %v2004
    %v2137 = vunpack.c.l.b16 %v2005
    %v2138 = vunpack.c.l.b16 %v2006
    %v2139 = vunpack.c.l.b16 %v2007
    %v2140 = vunpack.c.l.b16 %v2008
    %v2141 = vunpack.c.l.b16 %v2009
    %v2142 = vunpack.c.l.b16 %v2010
    %v2143 = vunpack.c.l.b16 %v2011
    %v2144 = vunpack.c.l.b16 %v2012
    %v2145 = vunpack.c.l.b16 %v2013
    %v2146 = vunpack.c.l.b16 %v2014
    %v2147 = vunpack.c.l.b16 %v2015
    %v2148 = vunpack.c.l.b16 %v2016
    %v2149 = vunpack.c.l.b16 %v2017
    %v2150 = vunpack.c.l.b16 %v2018
    %v2151 = vunpack.c.l.b16 %v2019
    %v2152 = vunpack.c.l.b16 %v2020
    %v2153 = vunpack.c.l.b16 %v2021
    %v2154 = vunpack.c.l.b16 %v2022
    %v2155 = vunpack.c.l.b16 %v2023
    %v2156 = vunpack.c.l.b16 %v2024
    %v2157 = vunpack.c.l.b16 %v2025
    %v2158 = vunpack.c.l.b16 %v2026
    %v2159 = vunpack.c.l.b16 %v2027
    %v2160 = vpack.c.b16 %v2097, %v2096
    %v2161 = vpack.c.b16 %v2099, %v2098
    %v2162 = vpack.c.b16 %v2101, %v2100
    %v2163 = vpack.c.b16 %v2103, %v2102
    %v2164 = vpack.c.b16 %v2105, %v2104
    %v2165 = vpack.c.b16 %v2107, %v2106
    %v2166 = vpack.c.b16 %v2109, %v2108
    %v2167 = vpack.c.b16 %v2111, %v2110
    %v2168 = vpack.c.b16 %v2113, %v2112
    %v2169 = vpack.c.b16 %v2115, %v2114
    %v2170 = vpack.c.b16 %v2117, %v2116
    %v2171 = vpack.c.b16 %v2119, %v2118
    %v2172 = vpack.c.b16 %v2121, %v2120
    %v2173 = vpack.c.b16 %v2123, %v2122
    %v2174 = vpack.c.b16 %v2125, %v2124
    %v2175 = vpack.c.b16 %v2127, %v2126
    %v2176 = vpack.c.b16 %v2129, %v2128
    %v2177 = vpack.c.b16 %v2131, %v2130
    %v2178 = vpack.c.b16 %v2133, %v2132
    %v2179 = vpack.c.b16 %v2135, %v2134
    %v2180 = vpack.c.b16 %v2137, %v2136
    %v2181 = vpack.c.b16 %v2139, %v2138
    %v2182 = vpack.c.b16 %v2141, %v2140
    %v2183 = vpack.c.b16 %v2143, %v2142
    %v2184 = vpack.c.b16 %v2145, %v2144
    %v2185 = vpack.c.b16 %v2147, %v2146
    %v2186 = vpack.c.b16 %v2149, %v2148
    %v2187 = vpack.c.b16 %v2151, %v2150
    %v2188 = vpack.c.b16 %v2153, %v2152
    %v2189 = vpack.c.b16 %v2155, %v2154
    %v2190 = vpack.c.b16 %v2157, %v2156
    %v2191 = vpack.c.b16 %v2159, %v2158
    %2224 = vmatpush.bf16.msra.mxu0 %v2167
    %2225 = vmatpush.bf16.msra.mxu0 %v2166
    %2226 = vmatpush.bf16.msra.mxu0 %v2165
    %2227 = vmatpush.bf16.msra.mxu0 %v2164
    %2228 = vmatpush.bf16.msra.mxu0 %v2163
    %2229 = vmatpush.bf16.msra.mxu0 %v2162
    %2230 = vmatpush.bf16.msra.mxu0 %v2161
    %2231 = vmatpush.bf16.msra.mxu0 %v2160
    %2232 = vmatmul.bf16.gmra.mxu0 %v1960
    %v2233 = vpop.f32.mrf.mxu0
    %v2234 = vadd.f32 %v2030, %v2233
    %v2235 = vpop.f32.mrf.mxu0
    %2236 = vdwg.mxu0
    %2237 = vmatpush.bf16.msra.mxu0 %v2175
    %2238 = vmatpush.bf16.msra.mxu0 %v2174
    %2239 = vmatpush.bf16.msra.mxu0 %v2173
    %2240 = vmatpush.bf16.msra.mxu0 %v2172
    %2241 = vmatpush.bf16.msra.mxu0 %v2171
    %2242 = vmatpush.bf16.msra.mxu0 %v2170
    %2243 = vmatpush.bf16.msra.mxu0 %v2169
    %2244 = vmatpush.bf16.msra.mxu0 %v2168
    %2245 = vmatmul.bf16.gmra.mxu0 %v1961
    %v2246 = vpop.f32.mrf.mxu0
    %v2247 = vadd.f32 %v2234, %v2246
    %v2248 = vpop.f32.mrf.mxu0
    %2249 = vdwg.mxu0
    %2250 = vmatpush.bf16.msra.mxu0 %v2183
    %2251 = vmatpush.bf16.msra.mxu0 %v2182
    %2252 = vmatpush.bf16.msra.mxu0 %v2181
    %2253 = vmatpush.bf16.msra.mxu0 %v2180
    %2254 = vmatpush.bf16.msra.mxu0 %v2179
    %2255 = vmatpush.bf16.msra.mxu0 %v2178
    %2256 = vmatpush.bf16.msra.mxu0 %v2177
    %2257 = vmatpush.bf16.msra.mxu0 %v2176
    %2258 = vmatmul.bf16.gmra.mxu0 %v1962
    %v2259 = vpop.f32.mrf.mxu0
    %v2260 = vadd.f32 %v2247, %v2259
    %v2261 = vpop.f32.mrf.mxu0
    %2262 = vdwg.mxu0
    %2263 = vmatpush.bf16.msra.mxu0 %v2191
    %2264 = vmatpush.bf16.msra.mxu0 %v2190
    %2265 = vmatpush.bf16.msra.mxu0 %v2189
    %2266 = vmatpush.bf16.msra.mxu0 %v2188
    %2267 = vmatpush.bf16.msra.mxu0 %v2187
    %2268 = vmatpush.bf16.msra.mxu0 %v2186
    %2269 = vmatpush.bf16.msra.mxu0 %v2185
    %2270 = vmatpush.bf16.msra.mxu0 %v2184
    %2271 = vmatmul.bf16.gmra.mxu0 %v1963
    %v2272 = vpop.f32.mrf.mxu0
    %v2273 = vadd.f32 %v2260, %v2272
    %v2274 = vpop.f32.mrf.mxu0
    %2275 = vdwg.mxu0
    %v2276 = vtanh.pop %v2273
    %2277 = vst [vmem:[%s8] sm:$0x3] %v2276
    // Predicated region
    $region62: #{pro_generator_forward.1} parent=1 // pred_check
      _
    $region63: #{pro_generator_forward.1} parent=1 // pred_check_branch
      %2279 = sbr.rel (0) target = $region65
    $region64: #{pro_generator_forward.1} parent=1 // pred_region
      _
    $region65: #{pro_generator_forward.1} parent=1 // pred_fallthru
      _
    // Predicated region
    $region66: #{pro_generator_forward.1} parent=1 // pred_check
      _
    $region67: #{pro_generator_forward.1} parent=1 // pred_check_branch
      %2281 = sbr.rel (0) target = $region69
    $region68: #{pro_generator_forward.1} parent=1 // pred_region
      _
    $region69: #{pro_generator_forward.1} parent=1 // pred_fallthru
      _
    %2282 = vsyncpa [#allocation3], 1
    %2283 = vsyncpa [#allocation5], 1
    %2284 = vsyncpa [#allocation8], 1
    %2285 = vsyncpa [#allocation11], 1

</llo_original>
